<compile_context>
chip_gen: v7x
topology: tpu7x:2x2x1
jax: 0.10.0
libtpu: 0.0.40
codegen_flags: <defaults>
</compile_context>

<pallas_src>
import jax
import jax.numpy as jnp
from jax import lax
from jax.experimental import pallas as pl
from jax.experimental.pallas import tpu as pltpu  # noqa: F401  (kept for TPU-specific tuning hooks)


def _encoder_lstm_forward(x, input_lengths, w_ih_t, w_hh_t, bias):
    """x: (T,B,D) f32, input_lengths: (B,) int32,
    w_ih_t: (D,4H), w_hh_t: (H,4H), bias: (1,4H)."""
    T, B, D = x.shape
    H = w_hh_t.shape[0]
    H4 = 4 * H

    def kernel(x_ref, len_ref, wih_ref, whh_ref, b_ref, out_ref, ho_ref, co_ref):
        # Hoisted input projection: one MXU matmul covering all T timesteps.
        xw = jnp.dot(x_ref[...], wih_ref[...],
                     preferred_element_type=jnp.float32) + b_ref[...]    # (T*B, 4H)
        lengths = len_ref[...]                                           # (B, 1) int32
        whh = whh_ref[...]                                               # (H, 4H)

        # Hoisted lane mask selecting the cell-gate ("g", tanh) columns of the
        # fused gate block. PyTorch LSTM gate order along 4H: i | f | g | o.
        col = lax.broadcasted_iota(jnp.int32, (B, H4), 1)
        is_g_col = (col >= 2 * H) & (col < 3 * H)

        h = jnp.zeros((B, H), jnp.float32)
        c = jnp.zeros((B, H), jnp.float32)
        out_cols = []

        # TODO(synk): on v6e/v7x the matmul operands could be cast to bf16
        # (f32 accumulate) to halve MXU/DMA bytes; kept f32 for exact parity.
        for t in range(T):  # static unroll; only the h/c path is serially dependent
            gates = xw[t * B:(t + 1) * B, :] + jnp.dot(
                h, whh, preferred_element_type=jnp.float32)              # (B, 4H)
            # Two full-width EUP passes + one lane select (fewer serial EUP ops
            # than 4 narrow per-gate activations).
            act = jnp.where(is_g_col, jnp.tanh(gates), jax.nn.sigmoid(gates))
            i_g = act[:, 0 * H:1 * H]
            f_g = act[:, 1 * H:2 * H]
            g_g = act[:, 2 * H:3 * H]
            o_g = act[:, 3 * H:4 * H]
            c_new = f_g * c + i_g * g_g
            h_new = o_g * jnp.tanh(c_new)

            valid = t < lengths                                          # (B, 1) bool
            # packed-sequence semantics: freeze state past length, zero padded outputs.
            h = jnp.where(valid, h_new, h)
            c = jnp.where(valid, c_new, c)
            out_cols.append(jnp.where(valid, h_new, 0.0))

        # Single lane-dense (B, T*H) store (unmasked) off the serial critical path.
        out_ref[...] = jnp.concatenate(out_cols, axis=1)
        ho_ref[...] = h
        co_ref[...] = c

    x2d = x.reshape(T * B, D)                              # row t*B + b == x[t, b]
    len_col = input_lengths.reshape(B, 1).astype(jnp.int32)

    out_flat, h_o, c_o = pl.pallas_call(
        kernel,
        out_shape=(
            jax.ShapeDtypeStruct((B, T * H), jnp.float32),  # lane-dense output slab
            jax.ShapeDtypeStruct((B, H), jnp.float32),
            jax.ShapeDtypeStruct((B, H), jnp.float32),
        ),
    )(x2d, len_col, w_ih_t, w_hh_t, bias)

    # Free layout plumbing back to (T, B, H).
    outputs = out_flat.reshape(B, T, H).transpose(1, 0, 2)
    return outputs, (h_o[None], c_o[None])


encoder_lstm_forward = jax.jit(_encoder_lstm_forward)


def _reference_lstm(x, lengths, w_ih_t, w_hh_t, bias):
    """Pure-JAX reference reproducing nn.LSTM + pack/pad_packed semantics."""
    T, B, D = x.shape
    H = w_hh_t.shape[0]
    mask = jnp.arange(T)[:, None] < lengths[None, :]        # (T, B) bool

    def step(carry, inp):
        h, c = carry
        x_t, m_t = inp
        gates = (x_t @ w_ih_t + bias) + h @ w_hh_t
        i_g = jax.nn.sigmoid(gates[:, 0 * H:1 * H])
        f_g = jax.nn.sigmoid(gates[:, 1 * H:2 * H])
        g_g = jnp.tanh(gates[:, 2 * H:3 * H])
        o_g = jax.nn.sigmoid(gates[:, 3 * H:4 * H])
        c_new = f_g * c + i_g * g_g
        h_new = o_g * jnp.tanh(c_new)
        m = m_t[:, None]
        h2 = jnp.where(m, h_new, h)
        c2 = jnp.where(m, c_new, c)
        return (h2, c2), jnp.where(m, h_new, 0.0)

    (h_o, c_o), outs = lax.scan(step,
                                (jnp.zeros((B, H)), jnp.zeros((B, H))),
                                (x, mask))
    return outs, (h_o[None], c_o[None])


if __name__ == "__main__":
    # Small shapes consistent with the module: seq T=8, batch B=8, input D=16, hidden H=32.
    T, B, D, H = 8, 8, 16, 32
    key = jax.random.PRNGKey(0)
    kx, k1, k2, k3, k4 = jax.random.split(key, 5)

    x = jax.random.normal(kx, (T, B, D), dtype=jnp.float32)
    input_lengths = jnp.array([8, 5, 8, 3, 1, 7, 8, 2], dtype=jnp.int32)

    # Deterministic init, same scheme as nn.LSTM: U(-1/sqrt(H), 1/sqrt(H)).
    # PyTorch layouts: weight_ih_l0 (4H, D), weight_hh_l0 (4H, H), bias_ih/hh (4H,).
    bound = 1.0 / (H ** 0.5)
    w_ih = jax.random.uniform(k1, (4 * H, D), minval=-bound, maxval=bound, dtype=jnp.float32)
    w_hh = jax.random.uniform(k2, (4 * H, H), minval=-bound, maxval=bound, dtype=jnp.float32)
    b_ih = jax.random.uniform(k3, (4 * H,), minval=-bound, maxval=bound, dtype=jnp.float32)
    b_hh = jax.random.uniform(k4, (4 * H,), minval=-bound, maxval=bound, dtype=jnp.float32)

    w_ih_t = w_ih.T                      # (D, 4H)
    w_hh_t = w_hh.T                      # (H, 4H)
    bias = (b_ih + b_hh).reshape(1, 4 * H)

    outputs, (h_o, c_o) = encoder_lstm_forward(x, input_lengths, w_ih_t, w_hh_t, bias)
    jax.block_until_ready((outputs, h_o, c_o))

    # pad_packed_sequence returns seq length = max(input_lengths); trim (glue).
    max_len = int(input_lengths.max())
    outputs = outputs[:max_len]

    # Verify against a pure-JAX reference of the packed-LSTM semantics.
    ref_out, (ref_h, ref_c) = _reference_lstm(x, input_lengths, w_ih_t, w_hh_t, bias)
    ref_out = ref_out[:max_len]
    assert jnp.allclose(outputs, ref_out, atol=1e-5, rtol=1e-5)
    assert jnp.allclose(h_o, ref_h, atol=1e-5, rtol=1e-5)
    assert jnp.allclose(c_o, ref_c, atol=1e-5, rtol=1e-5)

    print("KERNEL_OK")
</pallas_src>

<mosaic_0001>
module attributes {stable_mosaic.version = 11 : i64} {
  func.func @kernel(%arg0: memref<64x16xf32, #tpu.memory_space<vmem>>, %arg1: memref<8x1xi32, #tpu.memory_space<vmem>>, %arg2: memref<16x128xf32, #tpu.memory_space<vmem>>, %arg3: memref<32x128xf32, #tpu.memory_space<vmem>>, %arg4: memref<1x128xf32, #tpu.memory_space<vmem>>, %arg5: memref<8x256xf32, #tpu.memory_space<vmem>>, %arg6: memref<8x32xf32, #tpu.memory_space<vmem>>, %arg7: memref<8x32xf32, #tpu.memory_space<vmem>>) attributes {dimension_semantics = [], scalar_prefetch = 0 : i64, scratch_operands = 0 : i64, tpu.core_type = #tpu.core_type<tc>} {
    %c0 = arith.constant 0 : index
    %c0_0 = arith.constant 0 : index
    %0 = vector.load %arg0[%c0, %c0_0] : memref<64x16xf32, #tpu.memory_space<vmem>>, vector<64x16xf32>
    %c0_1 = arith.constant 0 : index
    %c0_2 = arith.constant 0 : index
    %1 = vector.load %arg2[%c0_1, %c0_2] : memref<16x128xf32, #tpu.memory_space<vmem>>, vector<16x128xf32>
    %cst = arith.constant dense<0.000000e+00> : vector<64x128xf32>
    %2 = tpu.matmul %0, %1, %cst {dimension_numbers = #tpu.dot_dimension_numbers<[1], [0], [0], [1], [0, 0, 1, 1], [], []>} : vector<64x16xf32>, vector<16x128xf32>, vector<64x128xf32> -> vector<64x128xf32>
    %c0_3 = arith.constant 0 : index
    %c0_4 = arith.constant 0 : index
    %3 = vector.load %arg4[%c0_3, %c0_4] : memref<1x128xf32, #tpu.memory_space<vmem>>, vector<1x128xf32>
    %4 = vector.broadcast %3 : vector<1x128xf32> to vector<64x128xf32>
    %5 = arith.addf %2, %4 : vector<64x128xf32>
    %c0_5 = arith.constant 0 : index
    %c0_6 = arith.constant 0 : index
    %6 = vector.load %arg1[%c0_5, %c0_6] : memref<8x1xi32, #tpu.memory_space<vmem>>, vector<8x1xi32>
    %c0_7 = arith.constant 0 : index
    %c0_8 = arith.constant 0 : index
    %7 = vector.load %arg3[%c0_7, %c0_8] : memref<32x128xf32, #tpu.memory_space<vmem>>, vector<32x128xf32>
    %8 = tpu.iota {dimensions = array<i32: 1>} : vector<8x128xi32>
    %c64_i32 = arith.constant 64 : i32
    %9 = vector.broadcast %c64_i32 : i32 to vector<8x128xi32>
    %10 = arith.cmpi sge, %8, %9 : vector<8x128xi32>
    %c96_i32 = arith.constant 96 : i32
    %11 = vector.broadcast %c96_i32 : i32 to vector<8x128xi32>
    %12 = arith.cmpi slt, %8, %11 : vector<8x128xi32>
    %13 = arith.andi %10, %12 : vector<8x128xi1>
    %cst_9 = arith.constant 0.000000e+00 : f32
    %14 = vector.broadcast %cst_9 : f32 to vector<8x32xf32>
    %cst_10 = arith.constant 0.000000e+00 : f32
    %15 = vector.broadcast %cst_10 : f32 to vector<8x32xf32>
    %16 = vector.extract_strided_slice %5 {offsets = [0, 0], sizes = [8, 128], strides = [1, 1]} : vector<64x128xf32> to vector<8x128xf32>
    %cst_11 = arith.constant dense<0.000000e+00> : vector<8x128xf32>
    %17 = tpu.matmul %14, %7, %cst_11 {dimension_numbers = #tpu.dot_dimension_numbers<[1], [0], [0], [1], [0, 0, 1, 1], [], []>} : vector<8x32xf32>, vector<32x128xf32>, vector<8x128xf32> -> vector<8x128xf32>
    %18 = arith.addf %16, %17 : vector<8x128xf32>
    %19 = math.tanh %18 : vector<8x128xf32>
    %20 = arith.negf %18 : vector<8x128xf32>
    %21 = math.exp %20 : vector<8x128xf32>
    %cst_12 = arith.constant 1.000000e+00 : f32
    %22 = vector.broadcast %cst_12 : f32 to vector<8x128xf32>
    %23 = arith.addf %22, %21 : vector<8x128xf32>
    %24 = arith.divf %22, %23 : vector<8x128xf32>
    %25 = arith.select %13, %19, %24 : vector<8x128xi1>, vector<8x128xf32>
    %26 = vector.extract_strided_slice %25 {offsets = [0, 0], sizes = [8, 32], strides = [1, 1]} : vector<8x128xf32> to vector<8x32xf32>
    %27 = vector.extract_strided_slice %25 {offsets = [0, 32], sizes = [8, 32], strides = [1, 1]} : vector<8x128xf32> to vector<8x32xf32>
    %28 = vector.extract_strided_slice %25 {offsets = [0, 64], sizes = [8, 32], strides = [1, 1]} : vector<8x128xf32> to vector<8x32xf32>
    %29 = vector.extract_strided_slice %25 {offsets = [0, 96], sizes = [8, 32], strides = [1, 1]} : vector<8x128xf32> to vector<8x32xf32>
    %30 = arith.mulf %27, %15 : vector<8x32xf32>
    %31 = arith.mulf %26, %28 : vector<8x32xf32>
    %32 = arith.addf %30, %31 : vector<8x32xf32>
    %33 = math.tanh %32 : vector<8x32xf32>
    %34 = arith.mulf %29, %33 : vector<8x32xf32>
    %c0_i32 = arith.constant 0 : i32
    %35 = vector.broadcast %c0_i32 : i32 to vector<8x1xi32>
    %36 = arith.cmpi sgt, %6, %35 : vector<8x1xi32>
    %37 = vector.shape_cast %36 : vector<8x1xi1> to vector<8x1xi1>
    %38 = vector.broadcast %37 : vector<8x1xi1> to vector<8x32xi1>
    %39 = arith.select %38, %34, %14 : vector<8x32xi1>, vector<8x32xf32>
    %40 = vector.shape_cast %36 : vector<8x1xi1> to vector<8x1xi1>
    %41 = vector.broadcast %40 : vector<8x1xi1> to vector<8x32xi1>
    %42 = arith.select %41, %32, %15 : vector<8x32xi1>, vector<8x32xf32>
    %cst_13 = arith.constant 0.000000e+00 : f32
    %43 = vector.shape_cast %36 : vector<8x1xi1> to vector<8x1xi1>
    %44 = vector.broadcast %43 : vector<8x1xi1> to vector<8x32xi1>
    %45 = vector.broadcast %cst_13 : f32 to vector<8x32xf32>
    %46 = arith.select %44, %34, %45 : vector<8x32xi1>, vector<8x32xf32>
    %47 = vector.extract_strided_slice %5 {offsets = [8, 0], sizes = [8, 128], strides = [1, 1]} : vector<64x128xf32> to vector<8x128xf32>
    %cst_14 = arith.constant dense<0.000000e+00> : vector<8x128xf32>
    %48 = tpu.matmul %39, %7, %cst_14 {dimension_numbers = #tpu.dot_dimension_numbers<[1], [0], [0], [1], [0, 0, 1, 1], [], []>} : vector<8x32xf32>, vector<32x128xf32>, vector<8x128xf32> -> vector<8x128xf32>
    %49 = arith.addf %47, %48 : vector<8x128xf32>
    %50 = math.tanh %49 : vector<8x128xf32>
    %51 = arith.negf %49 : vector<8x128xf32>
    %52 = math.exp %51 : vector<8x128xf32>
    %cst_15 = arith.constant 1.000000e+00 : f32
    %53 = vector.broadcast %cst_15 : f32 to vector<8x128xf32>
    %54 = arith.addf %53, %52 : vector<8x128xf32>
    %55 = arith.divf %53, %54 : vector<8x128xf32>
    %56 = arith.select %13, %50, %55 : vector<8x128xi1>, vector<8x128xf32>
    %57 = vector.extract_strided_slice %56 {offsets = [0, 0], sizes = [8, 32], strides = [1, 1]} : vector<8x128xf32> to vector<8x32xf32>
    %58 = vector.extract_strided_slice %56 {offsets = [0, 32], sizes = [8, 32], strides = [1, 1]} : vector<8x128xf32> to vector<8x32xf32>
    %59 = vector.extract_strided_slice %56 {offsets = [0, 64], sizes = [8, 32], strides = [1, 1]} : vector<8x128xf32> to vector<8x32xf32>
    %60 = vector.extract_strided_slice %56 {offsets = [0, 96], sizes = [8, 32], strides = [1, 1]} : vector<8x128xf32> to vector<8x32xf32>
    %61 = arith.mulf %58, %42 : vector<8x32xf32>
    %62 = arith.mulf %57, %59 : vector<8x32xf32>
    %63 = arith.addf %61, %62 : vector<8x32xf32>
    %64 = math.tanh %63 : vector<8x32xf32>
    %65 = arith.mulf %60, %64 : vector<8x32xf32>
    %c1_i32 = arith.constant 1 : i32
    %66 = vector.broadcast %c1_i32 : i32 to vector<8x1xi32>
    %67 = arith.cmpi sgt, %6, %66 : vector<8x1xi32>
    %68 = vector.shape_cast %67 : vector<8x1xi1> to vector<8x1xi1>
    %69 = vector.broadcast %68 : vector<8x1xi1> to vector<8x32xi1>
    %70 = arith.select %69, %65, %39 : vector<8x32xi1>, vector<8x32xf32>
    %71 = vector.shape_cast %67 : vector<8x1xi1> to vector<8x1xi1>
    %72 = vector.broadcast %71 : vector<8x1xi1> to vector<8x32xi1>
    %73 = arith.select %72, %63, %42 : vector<8x32xi1>, vector<8x32xf32>
    %cst_16 = arith.constant 0.000000e+00 : f32
    %74 = vector.shape_cast %67 : vector<8x1xi1> to vector<8x1xi1>
    %75 = vector.broadcast %74 : vector<8x1xi1> to vector<8x32xi1>
    %76 = vector.broadcast %cst_16 : f32 to vector<8x32xf32>
    %77 = arith.select %75, %65, %76 : vector<8x32xi1>, vector<8x32xf32>
    %78 = vector.extract_strided_slice %5 {offsets = [16, 0], sizes = [8, 128], strides = [1, 1]} : vector<64x128xf32> to vector<8x128xf32>
    %cst_17 = arith.constant dense<0.000000e+00> : vector<8x128xf32>
    %79 = tpu.matmul %70, %7, %cst_17 {dimension_numbers = #tpu.dot_dimension_numbers<[1], [0], [0], [1], [0, 0, 1, 1], [], []>} : vector<8x32xf32>, vector<32x128xf32>, vector<8x128xf32> -> vector<8x128xf32>
    %80 = arith.addf %78, %79 : vector<8x128xf32>
    %81 = math.tanh %80 : vector<8x128xf32>
    %82 = arith.negf %80 : vector<8x128xf32>
    %83 = math.exp %82 : vector<8x128xf32>
    %cst_18 = arith.constant 1.000000e+00 : f32
    %84 = vector.broadcast %cst_18 : f32 to vector<8x128xf32>
    %85 = arith.addf %84, %83 : vector<8x128xf32>
    %86 = arith.divf %84, %85 : vector<8x128xf32>
    %87 = arith.select %13, %81, %86 : vector<8x128xi1>, vector<8x128xf32>
    %88 = vector.extract_strided_slice %87 {offsets = [0, 0], sizes = [8, 32], strides = [1, 1]} : vector<8x128xf32> to vector<8x32xf32>
    %89 = vector.extract_strided_slice %87 {offsets = [0, 32], sizes = [8, 32], strides = [1, 1]} : vector<8x128xf32> to vector<8x32xf32>
    %90 = vector.extract_strided_slice %87 {offsets = [0, 64], sizes = [8, 32], strides = [1, 1]} : vector<8x128xf32> to vector<8x32xf32>
    %91 = vector.extract_strided_slice %87 {offsets = [0, 96], sizes = [8, 32], strides = [1, 1]} : vector<8x128xf32> to vector<8x32xf32>
    %92 = arith.mulf %89, %73 : vector<8x32xf32>
    %93 = arith.mulf %88, %90 : vector<8x32xf32>
    %94 = arith.addf %92, %93 : vector<8x32xf32>
    %95 = math.tanh %94 : vector<8x32xf32>
    %96 = arith.mulf %91, %95 : vector<8x32xf32>
    %c2_i32 = arith.constant 2 : i32
    %97 = vector.broadcast %c2_i32 : i32 to vector<8x1xi32>
    %98 = arith.cmpi sgt, %6, %97 : vector<8x1xi32>
    %99 = vector.shape_cast %98 : vector<8x1xi1> to vector<8x1xi1>
    %100 = vector.broadcast %99 : vector<8x1xi1> to vector<8x32xi1>
    %101 = arith.select %100, %96, %70 : vector<8x32xi1>, vector<8x32xf32>
    %102 = vector.shape_cast %98 : vector<8x1xi1> to vector<8x1xi1>
    %103 = vector.broadcast %102 : vector<8x1xi1> to vector<8x32xi1>
    %104 = arith.select %103, %94, %73 : vector<8x32xi1>, vector<8x32xf32>
    %cst_19 = arith.constant 0.000000e+00 : f32
    %105 = vector.shape_cast %98 : vector<8x1xi1> to vector<8x1xi1>
    %106 = vector.broadcast %105 : vector<8x1xi1> to vector<8x32xi1>
    %107 = vector.broadcast %cst_19 : f32 to vector<8x32xf32>
    %108 = arith.select %106, %96, %107 : vector<8x32xi1>, vector<8x32xf32>
    %109 = vector.extract_strided_slice %5 {offsets = [24, 0], sizes = [8, 128], strides = [1, 1]} : vector<64x128xf32> to vector<8x128xf32>
    %cst_20 = arith.constant dense<0.000000e+00> : vector<8x128xf32>
    %110 = tpu.matmul %101, %7, %cst_20 {dimension_numbers = #tpu.dot_dimension_numbers<[1], [0], [0], [1], [0, 0, 1, 1], [], []>} : vector<8x32xf32>, vector<32x128xf32>, vector<8x128xf32> -> vector<8x128xf32>
    %111 = arith.addf %109, %110 : vector<8x128xf32>
    %112 = math.tanh %111 : vector<8x128xf32>
    %113 = arith.negf %111 : vector<8x128xf32>
    %114 = math.exp %113 : vector<8x128xf32>
    %cst_21 = arith.constant 1.000000e+00 : f32
    %115 = vector.broadcast %cst_21 : f32 to vector<8x128xf32>
    %116 = arith.addf %115, %114 : vector<8x128xf32>
    %117 = arith.divf %115, %116 : vector<8x128xf32>
    %118 = arith.select %13, %112, %117 : vector<8x128xi1>, vector<8x128xf32>
    %119 = vector.extract_strided_slice %118 {offsets = [0, 0], sizes = [8, 32], strides = [1, 1]} : vector<8x128xf32> to vector<8x32xf32>
    %120 = vector.extract_strided_slice %118 {offsets = [0, 32], sizes = [8, 32], strides = [1, 1]} : vector<8x128xf32> to vector<8x32xf32>
    %121 = vector.extract_strided_slice %118 {offsets = [0, 64], sizes = [8, 32], strides = [1, 1]} : vector<8x128xf32> to vector<8x32xf32>
    %122 = vector.extract_strided_slice %118 {offsets = [0, 96], sizes = [8, 32], strides = [1, 1]} : vector<8x128xf32> to vector<8x32xf32>
    %123 = arith.mulf %120, %104 : vector<8x32xf32>
    %124 = arith.mulf %119, %121 : vector<8x32xf32>
    %125 = arith.addf %123, %124 : vector<8x32xf32>
    %126 = math.tanh %125 : vector<8x32xf32>
    %127 = arith.mulf %122, %126 : vector<8x32xf32>
    %c3_i32 = arith.constant 3 : i32
    %128 = vector.broadcast %c3_i32 : i32 to vector<8x1xi32>
    %129 = arith.cmpi sgt, %6, %128 : vector<8x1xi32>
    %130 = vector.shape_cast %129 : vector<8x1xi1> to vector<8x1xi1>
    %131 = vector.broadcast %130 : vector<8x1xi1> to vector<8x32xi1>
    %132 = arith.select %131, %127, %101 : vector<8x32xi1>, vector<8x32xf32>
    %133 = vector.shape_cast %129 : vector<8x1xi1> to vector<8x1xi1>
    %134 = vector.broadcast %133 : vector<8x1xi1> to vector<8x32xi1>
    %135 = arith.select %134, %125, %104 : vector<8x32xi1>, vector<8x32xf32>
    %cst_22 = arith.constant 0.000000e+00 : f32
    %136 = vector.shape_cast %129 : vector<8x1xi1> to vector<8x1xi1>
    %137 = vector.broadcast %136 : vector<8x1xi1> to vector<8x32xi1>
    %138 = vector.broadcast %cst_22 : f32 to vector<8x32xf32>
    %139 = arith.select %137, %127, %138 : vector<8x32xi1>, vector<8x32xf32>
    %140 = vector.extract_strided_slice %5 {offsets = [32, 0], sizes = [8, 128], strides = [1, 1]} : vector<64x128xf32> to vector<8x128xf32>
    %cst_23 = arith.constant dense<0.000000e+00> : vector<8x128xf32>
    %141 = tpu.matmul %132, %7, %cst_23 {dimension_numbers = #tpu.dot_dimension_numbers<[1], [0], [0], [1], [0, 0, 1, 1], [], []>} : vector<8x32xf32>, vector<32x128xf32>, vector<8x128xf32> -> vector<8x128xf32>
    %142 = arith.addf %140, %141 : vector<8x128xf32>
    %143 = math.tanh %142 : vector<8x128xf32>
    %144 = arith.negf %142 : vector<8x128xf32>
    %145 = math.exp %144 : vector<8x128xf32>
    %cst_24 = arith.constant 1.000000e+00 : f32
    %146 = vector.broadcast %cst_24 : f32 to vector<8x128xf32>
    %147 = arith.addf %146, %145 : vector<8x128xf32>
    %148 = arith.divf %146, %147 : vector<8x128xf32>
    %149 = arith.select %13, %143, %148 : vector<8x128xi1>, vector<8x128xf32>
    %150 = vector.extract_strided_slice %149 {offsets = [0, 0], sizes = [8, 32], strides = [1, 1]} : vector<8x128xf32> to vector<8x32xf32>
    %151 = vector.extract_strided_slice %149 {offsets = [0, 32], sizes = [8, 32], strides = [1, 1]} : vector<8x128xf32> to vector<8x32xf32>
    %152 = vector.extract_strided_slice %149 {offsets = [0, 64], sizes = [8, 32], strides = [1, 1]} : vector<8x128xf32> to vector<8x32xf32>
    %153 = vector.extract_strided_slice %149 {offsets = [0, 96], sizes = [8, 32], strides = [1, 1]} : vector<8x128xf32> to vector<8x32xf32>
    %154 = arith.mulf %151, %135 : vector<8x32xf32>
    %155 = arith.mulf %150, %152 : vector<8x32xf32>
    %156 = arith.addf %154, %155 : vector<8x32xf32>
    %157 = math.tanh %156 : vector<8x32xf32>
    %158 = arith.mulf %153, %157 : vector<8x32xf32>
    %c4_i32 = arith.constant 4 : i32
    %159 = vector.broadcast %c4_i32 : i32 to vector<8x1xi32>
    %160 = arith.cmpi sgt, %6, %159 : vector<8x1xi32>
    %161 = vector.shape_cast %160 : vector<8x1xi1> to vector<8x1xi1>
    %162 = vector.broadcast %161 : vector<8x1xi1> to vector<8x32xi1>
    %163 = arith.select %162, %158, %132 : vector<8x32xi1>, vector<8x32xf32>
    %164 = vector.shape_cast %160 : vector<8x1xi1> to vector<8x1xi1>
    %165 = vector.broadcast %164 : vector<8x1xi1> to vector<8x32xi1>
    %166 = arith.select %165, %156, %135 : vector<8x32xi1>, vector<8x32xf32>
    %cst_25 = arith.constant 0.000000e+00 : f32
    %167 = vector.shape_cast %160 : vector<8x1xi1> to vector<8x1xi1>
    %168 = vector.broadcast %167 : vector<8x1xi1> to vector<8x32xi1>
    %169 = vector.broadcast %cst_25 : f32 to vector<8x32xf32>
    %170 = arith.select %168, %158, %169 : vector<8x32xi1>, vector<8x32xf32>
    %171 = vector.extract_strided_slice %5 {offsets = [40, 0], sizes = [8, 128], strides = [1, 1]} : vector<64x128xf32> to vector<8x128xf32>
    %cst_26 = arith.constant dense<0.000000e+00> : vector<8x128xf32>
    %172 = tpu.matmul %163, %7, %cst_26 {dimension_numbers = #tpu.dot_dimension_numbers<[1], [0], [0], [1], [0, 0, 1, 1], [], []>} : vector<8x32xf32>, vector<32x128xf32>, vector<8x128xf32> -> vector<8x128xf32>
    %173 = arith.addf %171, %172 : vector<8x128xf32>
    %174 = math.tanh %173 : vector<8x128xf32>
    %175 = arith.negf %173 : vector<8x128xf32>
    %176 = math.exp %175 : vector<8x128xf32>
    %cst_27 = arith.constant 1.000000e+00 : f32
    %177 = vector.broadcast %cst_27 : f32 to vector<8x128xf32>
    %178 = arith.addf %177, %176 : vector<8x128xf32>
    %179 = arith.divf %177, %178 : vector<8x128xf32>
    %180 = arith.select %13, %174, %179 : vector<8x128xi1>, vector<8x128xf32>
    %181 = vector.extract_strided_slice %180 {offsets = [0, 0], sizes = [8, 32], strides = [1, 1]} : vector<8x128xf32> to vector<8x32xf32>
    %182 = vector.extract_strided_slice %180 {offsets = [0, 32], sizes = [8, 32], strides = [1, 1]} : vector<8x128xf32> to vector<8x32xf32>
    %183 = vector.extract_strided_slice %180 {offsets = [0, 64], sizes = [8, 32], strides = [1, 1]} : vector<8x128xf32> to vector<8x32xf32>
    %184 = vector.extract_strided_slice %180 {offsets = [0, 96], sizes = [8, 32], strides = [1, 1]} : vector<8x128xf32> to vector<8x32xf32>
    %185 = arith.mulf %182, %166 : vector<8x32xf32>
    %186 = arith.mulf %181, %183 : vector<8x32xf32>
    %187 = arith.addf %185, %186 : vector<8x32xf32>
    %188 = math.tanh %187 : vector<8x32xf32>
    %189 = arith.mulf %184, %188 : vector<8x32xf32>
    %c5_i32 = arith.constant 5 : i32
    %190 = vector.broadcast %c5_i32 : i32 to vector<8x1xi32>
    %191 = arith.cmpi sgt, %6, %190 : vector<8x1xi32>
    %192 = vector.shape_cast %191 : vector<8x1xi1> to vector<8x1xi1>
    %193 = vector.broadcast %192 : vector<8x1xi1> to vector<8x32xi1>
    %194 = arith.select %193, %189, %163 : vector<8x32xi1>, vector<8x32xf32>
    %195 = vector.shape_cast %191 : vector<8x1xi1> to vector<8x1xi1>
    %196 = vector.broadcast %195 : vector<8x1xi1> to vector<8x32xi1>
    %197 = arith.select %196, %187, %166 : vector<8x32xi1>, vector<8x32xf32>
    %cst_28 = arith.constant 0.000000e+00 : f32
    %198 = vector.shape_cast %191 : vector<8x1xi1> to vector<8x1xi1>
    %199 = vector.broadcast %198 : vector<8x1xi1> to vector<8x32xi1>
    %200 = vector.broadcast %cst_28 : f32 to vector<8x32xf32>
    %201 = arith.select %199, %189, %200 : vector<8x32xi1>, vector<8x32xf32>
    %202 = vector.extract_strided_slice %5 {offsets = [48, 0], sizes = [8, 128], strides = [1, 1]} : vector<64x128xf32> to vector<8x128xf32>
    %cst_29 = arith.constant dense<0.000000e+00> : vector<8x128xf32>
    %203 = tpu.matmul %194, %7, %cst_29 {dimension_numbers = #tpu.dot_dimension_numbers<[1], [0], [0], [1], [0, 0, 1, 1], [], []>} : vector<8x32xf32>, vector<32x128xf32>, vector<8x128xf32> -> vector<8x128xf32>
    %204 = arith.addf %202, %203 : vector<8x128xf32>
    %205 = math.tanh %204 : vector<8x128xf32>
    %206 = arith.negf %204 : vector<8x128xf32>
    %207 = math.exp %206 : vector<8x128xf32>
    %cst_30 = arith.constant 1.000000e+00 : f32
    %208 = vector.broadcast %cst_30 : f32 to vector<8x128xf32>
    %209 = arith.addf %208, %207 : vector<8x128xf32>
    %210 = arith.divf %208, %209 : vector<8x128xf32>
    %211 = arith.select %13, %205, %210 : vector<8x128xi1>, vector<8x128xf32>
    %212 = vector.extract_strided_slice %211 {offsets = [0, 0], sizes = [8, 32], strides = [1, 1]} : vector<8x128xf32> to vector<8x32xf32>
    %213 = vector.extract_strided_slice %211 {offsets = [0, 32], sizes = [8, 32], strides = [1, 1]} : vector<8x128xf32> to vector<8x32xf32>
    %214 = vector.extract_strided_slice %211 {offsets = [0, 64], sizes = [8, 32], strides = [1, 1]} : vector<8x128xf32> to vector<8x32xf32>
    %215 = vector.extract_strided_slice %211 {offsets = [0, 96], sizes = [8, 32], strides = [1, 1]} : vector<8x128xf32> to vector<8x32xf32>
    %216 = arith.mulf %213, %197 : vector<8x32xf32>
    %217 = arith.mulf %212, %214 : vector<8x32xf32>
    %218 = arith.addf %216, %217 : vector<8x32xf32>
    %219 = math.tanh %218 : vector<8x32xf32>
    %220 = arith.mulf %215, %219 : vector<8x32xf32>
    %c6_i32 = arith.constant 6 : i32
    %221 = vector.broadcast %c6_i32 : i32 to vector<8x1xi32>
    %222 = arith.cmpi sgt, %6, %221 : vector<8x1xi32>
    %223 = vector.shape_cast %222 : vector<8x1xi1> to vector<8x1xi1>
    %224 = vector.broadcast %223 : vector<8x1xi1> to vector<8x32xi1>
    %225 = arith.select %224, %220, %194 : vector<8x32xi1>, vector<8x32xf32>
    %226 = vector.shape_cast %222 : vector<8x1xi1> to vector<8x1xi1>
    %227 = vector.broadcast %226 : vector<8x1xi1> to vector<8x32xi1>
    %228 = arith.select %227, %218, %197 : vector<8x32xi1>, vector<8x32xf32>
    %cst_31 = arith.constant 0.000000e+00 : f32
    %229 = vector.shape_cast %222 : vector<8x1xi1> to vector<8x1xi1>
    %230 = vector.broadcast %229 : vector<8x1xi1> to vector<8x32xi1>
    %231 = vector.broadcast %cst_31 : f32 to vector<8x32xf32>
    %232 = arith.select %230, %220, %231 : vector<8x32xi1>, vector<8x32xf32>
    %233 = vector.extract_strided_slice %5 {offsets = [56, 0], sizes = [8, 128], strides = [1, 1]} : vector<64x128xf32> to vector<8x128xf32>
    %cst_32 = arith.constant dense<0.000000e+00> : vector<8x128xf32>
    %234 = tpu.matmul %225, %7, %cst_32 {dimension_numbers = #tpu.dot_dimension_numbers<[1], [0], [0], [1], [0, 0, 1, 1], [], []>} : vector<8x32xf32>, vector<32x128xf32>, vector<8x128xf32> -> vector<8x128xf32>
    %235 = arith.addf %233, %234 : vector<8x128xf32>
    %236 = math.tanh %235 : vector<8x128xf32>
    %237 = arith.negf %235 : vector<8x128xf32>
    %238 = math.exp %237 : vector<8x128xf32>
    %cst_33 = arith.constant 1.000000e+00 : f32
    %239 = vector.broadcast %cst_33 : f32 to vector<8x128xf32>
    %240 = arith.addf %239, %238 : vector<8x128xf32>
    %241 = arith.divf %239, %240 : vector<8x128xf32>
    %242 = arith.select %13, %236, %241 : vector<8x128xi1>, vector<8x128xf32>
    %243 = vector.extract_strided_slice %242 {offsets = [0, 0], sizes = [8, 32], strides = [1, 1]} : vector<8x128xf32> to vector<8x32xf32>
    %244 = vector.extract_strided_slice %242 {offsets = [0, 32], sizes = [8, 32], strides = [1, 1]} : vector<8x128xf32> to vector<8x32xf32>
    %245 = vector.extract_strided_slice %242 {offsets = [0, 64], sizes = [8, 32], strides = [1, 1]} : vector<8x128xf32> to vector<8x32xf32>
    %246 = vector.extract_strided_slice %242 {offsets = [0, 96], sizes = [8, 32], strides = [1, 1]} : vector<8x128xf32> to vector<8x32xf32>
    %247 = arith.mulf %244, %228 : vector<8x32xf32>
    %248 = arith.mulf %243, %245 : vector<8x32xf32>
    %249 = arith.addf %247, %248 : vector<8x32xf32>
    %250 = math.tanh %249 : vector<8x32xf32>
    %251 = arith.mulf %246, %250 : vector<8x32xf32>
    %c7_i32 = arith.constant 7 : i32
    %252 = vector.broadcast %c7_i32 : i32 to vector<8x1xi32>
    %253 = arith.cmpi sgt, %6, %252 : vector<8x1xi32>
    %254 = vector.shape_cast %253 : vector<8x1xi1> to vector<8x1xi1>
    %255 = vector.broadcast %254 : vector<8x1xi1> to vector<8x32xi1>
    %256 = arith.select %255, %251, %225 : vector<8x32xi1>, vector<8x32xf32>
    %257 = vector.shape_cast %253 : vector<8x1xi1> to vector<8x1xi1>
    %258 = vector.broadcast %257 : vector<8x1xi1> to vector<8x32xi1>
    %259 = arith.select %258, %249, %228 : vector<8x32xi1>, vector<8x32xf32>
    %cst_34 = arith.constant 0.000000e+00 : f32
    %260 = vector.shape_cast %253 : vector<8x1xi1> to vector<8x1xi1>
    %261 = vector.broadcast %260 : vector<8x1xi1> to vector<8x32xi1>
    %262 = vector.broadcast %cst_34 : f32 to vector<8x32xf32>
    %263 = arith.select %261, %251, %262 : vector<8x32xi1>, vector<8x32xf32>
    %264 = tpu.concatenate %46, %77, %108, %139, %170, %201, %232, %263 in 1 : vector<8x32xf32>, vector<8x32xf32>, vector<8x32xf32>, vector<8x32xf32>, vector<8x32xf32>, vector<8x32xf32>, vector<8x32xf32>, vector<8x32xf32> -> vector<8x256xf32>
    %c0_35 = arith.constant 0 : index
    %c0_36 = arith.constant 0 : index
    %265 = vector.load %arg5[%c0_35, %c0_36] : memref<8x256xf32, #tpu.memory_space<vmem>>, vector<8x256xf32>
    tpu.vector_store %arg5[%c0_35, %c0_36], %264 {strides = array<i32>} : memref<8x256xf32, #tpu.memory_space<vmem>>, vector<8x256xf32>,
    %c0_37 = arith.constant 0 : index
    %c0_38 = arith.constant 0 : index
    %266 = vector.load %arg6[%c0_37, %c0_38] : memref<8x32xf32, #tpu.memory_space<vmem>>, vector<8x32xf32>
    tpu.vector_store %arg6[%c0_37, %c0_38], %256 {strides = array<i32>} : memref<8x32xf32, #tpu.memory_space<vmem>>, vector<8x32xf32>,
    %c0_39 = arith.constant 0 : index
    %c0_40 = arith.constant 0 : index
    %267 = vector.load %arg7[%c0_39, %c0_40] : memref<8x32xf32, #tpu.memory_space<vmem>>, vector<8x32xf32>
    tpu.vector_store %arg7[%c0_39, %c0_40], %259 {strides = array<i32>} : memref<8x32xf32, #tpu.memory_space<vmem>>, vector<8x32xf32>,
    return
  }
}

</mosaic_0001>

<llo_original>
// kernel: _encoder_lstm_forward.1
$region0: #{_encoder_lstm_forward.1}
  #allocation0 [shape = 'u32[]', space=smem, size = 0x4, offset = 0x4, fixed_abs, tag = 'smem constant byte address 0x4 - core index']
  #allocation1 [shape = 'u32[144,128]{1,0:T(1,128)}', space=vmem, size = 0x12000, scoped, tag = 'internal scratch']
  %s0 = inlined_call_operand.hbm [shape: f32[64,16], index: 0, kind: input, shape index: {}]
  %s1 = inlined_call_operand.vmem [shape: s32[8,1], index: 1, kind: input, shape index: {}]
  %s2 = inlined_call_operand.vmem [shape: f32[16,128], index: 2, kind: input, shape index: {}]
  %s3 = inlined_call_operand.hbm [shape: f32[32,128], index: 3, kind: input, shape index: {}]
  %s4 = inlined_call_operand.vmem [shape: f32[1,128], index: 4, kind: input, shape index: {}]
  %s5 = inlined_call_operand.vmem [shape: f32[8,256], index: 5, kind: output, shape index: {0}]
  %s6 = inlined_call_operand.hbm [shape: f32[8,32], index: 6, kind: output, shape index: {1}]
  %s7 = inlined_call_operand.hbm [shape: f32[8,32], index: 7, kind: output, shape index: {2}]
  %8 = xla_tuple %s5, %s6, %s7
  %s9 = sld [smem:[#allocation0]]
  $region54: #{_encoder_lstm_forward.1} parent=0
    _
  %s11 = ssub.s32 1, %s9
  %s12 = scalar_select 0, %s11, %s9
  $region1: #{_encoder_lstm_forward.1} parent=0
    #allocation2 [shape = 'u8[32768]{0}', space=vmem, size = 0x8000, scoped, tag = 'input window, operand 0, single buffered']
    #allocation3 [shape = 's32[1]{0}', space=sflag, size = 0x4, scoped, tag = 'scoped memory for _encoder_lstm_forward.1']
    #allocation4 [shape = 's32[1]{0}', space=sflag, size = 0x4, scoped, tag = 'scoped memory for _encoder_lstm_forward.1']
    #allocation5 [shape = 'u8[16384]{0}', space=vmem, size = 0x4000, scoped, tag = 'input window, operand 3, single buffered']
    #allocation6 [shape = 's32[1]{0}', space=sflag, size = 0x4, scoped, tag = 'scoped memory for _encoder_lstm_forward.1']
    #allocation7 [shape = 'u8[4096]{0}', space=vmem, size = 0x1000, scoped, tag = 'output window, operand 1, single buffered']
    #allocation8 [shape = 'u8[4096]{0}', space=vmem, size = 0x1000, scoped, tag = 'output window, operand 2, single buffered']
    #allocation9 [shape = 's32[1]{0}', space=sflag, size = 0x4, scoped, tag = 'scoped memory for _encoder_lstm_forward.1']
    %13 = vsyncpa [#allocation3], 0
    %14 = vsyncpa [#allocation6], 0
    %15 = vsyncpa [#allocation4], 0
    %16 = vsyncpa [#allocation9], 0
    // Predicated region
    $region2: #{_encoder_lstm_forward.1} parent=1 // pred_check
      _
    $region3: #{_encoder_lstm_forward.1} parent=1 // pred_check_branch
      %18 = sbr.rel (0) target = $region5
    $region4: #{_encoder_lstm_forward.1} parent=1 // pred_region
      %s20 = ssub.s32 1024, 1024
      %21 = vsyncadd [#allocation3], %s20
      %s22 = sshll.u32 [#allocation2], 4
      %s23 = int_to_ptr.vmem [resolvable:$true] %s22
      %28 = dma.hbm_to_vmem [thread:$0]  %s0, 1024, %s23, [#allocation3], 128, 128, 8
    $region5: #{_encoder_lstm_forward.1} parent=1 // pred_fallthru
      _
    // Predicated region
    $region6: #{_encoder_lstm_forward.1} parent=1 // pred_check
      _
    $region7: #{_encoder_lstm_forward.1} parent=1 // pred_check_branch
      %30 = sbr.rel (0) target = $region9
    $region8: #{_encoder_lstm_forward.1} parent=1 // pred_region
      _
    $region9: #{_encoder_lstm_forward.1} parent=1 // pred_fallthru
      _
    // Predicated region
    $region10: #{_encoder_lstm_forward.1} parent=1 // pred_check
      _
    $region11: #{_encoder_lstm_forward.1} parent=1 // pred_check_branch
      %32 = sbr.rel (0) target = $region13
    $region12: #{_encoder_lstm_forward.1} parent=1 // pred_region
      _
    $region13: #{_encoder_lstm_forward.1} parent=1 // pred_fallthru
      _
    // Predicated region
    $region14: #{_encoder_lstm_forward.1} parent=1 // pred_check
      _
    $region15: #{_encoder_lstm_forward.1} parent=1 // pred_check_branch
      %34 = sbr.rel (0) target = $region17
    $region16: #{_encoder_lstm_forward.1} parent=1 // pred_region
      %s36 = ssub.s32 512, 512
      %37 = vsyncadd [#allocation6], %s36
      %s38 = sshll.u32 [#allocation5], 4
      %s39 = int_to_ptr.vmem [resolvable:$true] %s38
      %44 = dma.hbm_to_vmem [thread:$0]  %s3, 512, %s39, [#allocation6], 128, 128, 8
    $region17: #{_encoder_lstm_forward.1} parent=1 // pred_fallthru
      _
    // Predicated region
    $region18: #{_encoder_lstm_forward.1} parent=1 // pred_check
      _
    $region19: #{_encoder_lstm_forward.1} parent=1 // pred_check_branch
      %46 = sbr.rel (0) target = $region21
    $region20: #{_encoder_lstm_forward.1} parent=1 // pred_region
      _
    $region21: #{_encoder_lstm_forward.1} parent=1 // pred_fallthru
      _
    // Predicated region
    $region22: #{_encoder_lstm_forward.1} parent=1 // pred_check
      _
    $region23: #{_encoder_lstm_forward.1} parent=1 // pred_check_branch
      %48 = sbr.rel (0) target = $region25
    $region24: #{_encoder_lstm_forward.1} parent=1 // pred_region
      %49 = dma.done [#allocation3], 1024
    $region25: #{_encoder_lstm_forward.1} parent=1 // pred_fallthru
      _
    // Predicated region
    $region26: #{_encoder_lstm_forward.1} parent=1 // pred_check
      _
    $region27: #{_encoder_lstm_forward.1} parent=1 // pred_check_branch
      %51 = sbr.rel (0) target = $region29
    $region28: #{_encoder_lstm_forward.1} parent=1 // pred_region
      %52 = dma.done [#allocation6], 512
    $region29: #{_encoder_lstm_forward.1} parent=1 // pred_fallthru
      _
    %v53 = vld [vmem:[#allocation2] sm:$0xff]
    %v54 = vld [vmem:[#allocation2 + $0x8] sm:$0xff]
    %v55 = vld [vmem:[#allocation2 + $0x10] sm:$0xff]
    %v56 = vld [vmem:[#allocation2 + $0x18] sm:$0xff]
    %v57 = vld [vmem:[#allocation2 + $0x20] sm:$0xff]
    %v58 = vld [vmem:[#allocation2 + $0x28] sm:$0xff]
    %v59 = vld [vmem:[#allocation2 + $0x30] sm:$0xff]
    %v60 = vld [vmem:[#allocation2 + $0x38] sm:$0xff]
    %v61 = vld [vmem:[%s2] sm:$0xff]
    %v62 = vld [vmem:[%s2 + $0x8] sm:$0xff]
    %v63 = vld [vmem:[%s4] sm:$0x1]
    %v65 = vlaneseq
    %v66 = vshrl.u32 %v65, 7
    %v67 = vsub.s32 0, %v66
    %v68 = vrot.slane %v63, %v67
    %vm70 = vcmask 130048
    %v72 = vsel %vm70, %v53, 0
    %v75 = vsel %vm70, %v54, 0
    %v78 = vsel %vm70, %v55, 0
    %v81 = vsel %vm70, %v56, 0
    %v84 = vsel %vm70, %v57, 0
    %v87 = vsel %vm70, %v58, 0
    %v90 = vsel %vm70, %v59, 0
    %v93 = vsel %vm70, %v60, 0
    %95 = vmatprep.subr.mxu0 0.0
    %96 = vmatpush1.msra.mxu0 %v61
    %97 = vmatprep.subr.mxu0 0.0
    %98 = vmatpush1.msra.mxu0 %v62
    %99 = vmatprep.subr.mxu0 0.0
    %100 = vmatpush1.msra.mxu0 0.0
    %101 = vmatprep.subr.mxu0 0.0
    %102 = vmatpush1.msra.mxu0 0.0
    %103 = vmatprep.subr.mxu0 0.0
    %104 = vmatpush1.msra.mxu0 0.0
    %105 = vmatprep.subr.mxu0 0.0
    %106 = vmatpush1.msra.mxu0 0.0
    %107 = vmatprep.subr.mxu0 0.0
    %108 = vmatpush1.msra.mxu0 0.0
    %109 = vmatprep.subr.mxu0 0.0
    %110 = vmatpush1.msra.mxu0 0.0
    %111 = vmatprep.subr.mxu0 0.0
    %112 = vmatpush1.msra.mxu0 0.0
    %113 = vmatprep.subr.mxu0 0.0
    %114 = vmatpush1.msra.mxu0 0.0
    %115 = vmatprep.subr.mxu0 0.0
    %116 = vmatpush1.msra.mxu0 0.0
    %117 = vmatprep.subr.mxu0 0.0
    %118 = vmatpush1.msra.mxu0 0.0
    %119 = vmatprep.subr.mxu0 0.0
    %120 = vmatpush1.msra.mxu0 0.0
    %121 = vmatprep.subr.mxu0 0.0
    %122 = vmatpush1.msra.mxu0 0.0
    %123 = vmatprep.subr.mxu0 0.0
    %124 = vmatpush1.msra.mxu0 0.0
    %125 = vmatprep.subr.mxu0 0.0
    %126 = vmatpush1.msra.mxu0 0.0
    %127 = vmatprep.subr.mxu0 0.0
    %128 = vmatpush1.msra.mxu0 0.0
    %129 = vmatprep.subr.mxu0 0.0
    %130 = vmatpush1.msra.mxu0 0.0
    %131 = vmatprep.subr.mxu0 0.0
    %132 = vmatpush1.msra.mxu0 0.0
    %133 = vmatprep.subr.mxu0 0.0
    %134 = vmatpush1.msra.mxu0 0.0
    %135 = vmatprep.subr.mxu0 0.0
    %136 = vmatpush1.msra.mxu0 0.0
    %137 = vmatprep.subr.mxu0 0.0
    %138 = vmatpush1.msra.mxu0 0.0
    %139 = vmatprep.subr.mxu0 0.0
    %140 = vmatpush1.msra.mxu0 0.0
    %141 = vmatprep.subr.mxu0 0.0
    %142 = vmatpush1.msra.mxu0 0.0
    %143 = vmatprep.subr.mxu0 0.0
    %144 = vmatpush1.msra.mxu0 0.0
    %145 = vmatprep.subr.mxu0 0.0
    %146 = vmatpush1.msra.mxu0 0.0
    %147 = vmatprep.subr.mxu0 0.0
    %148 = vmatpush1.msra.mxu0 0.0
    %149 = vmatprep.subr.mxu0 0.0
    %150 = vmatpush1.msra.mxu0 0.0
    %151 = vmatprep.subr.mxu0 0.0
    %152 = vmatpush1.msra.mxu0 0.0
    %153 = vmatprep.subr.mxu0 0.0
    %154 = vmatpush1.msra.mxu0 0.0
    %155 = vmatprep.subr.mxu0 0.0
    %156 = vmatpush1.msra.mxu0 0.0
    %157 = vmatprep.subr.mxu0 0.0
    %158 = vmatpush1.msra.mxu0 0.0
    %159 = vmatprep.mubr.f32.mxu0 0.0
    %160 = vmatmul.mubr.f32.gmra.mrb[0].mxu0 %v72
    %v161 = vpop.f32.mrb[0].mxu0
    %v162 = vadd.f32 %v68, %v161
    %v163 = vpop.f32.mrb[0].mxu0
    %164 = vmatprep.mubr.f32.mxu0 0.0
    %165 = vmatmul.mubr.f32.gmra.mrb[0].mxu0 %v75
    %v166 = vpop.f32.mrb[0].mxu0
    %v167 = vadd.f32 %v68, %v166
    %v168 = vpop.f32.mrb[0].mxu0
    %169 = vmatprep.mubr.f32.mxu0 0.0
    %170 = vmatmul.mubr.f32.gmra.mrb[0].mxu0 %v78
    %v171 = vpop.f32.mrb[0].mxu0
    %v172 = vadd.f32 %v68, %v171
    %v173 = vpop.f32.mrb[0].mxu0
    %174 = vmatprep.mubr.f32.mxu0 0.0
    %175 = vmatmul.mubr.f32.gmra.mrb[0].mxu0 %v81
    %v176 = vpop.f32.mrb[0].mxu0
    %v177 = vadd.f32 %v68, %v176
    %v178 = vpop.f32.mrb[0].mxu0
    %179 = vmatprep.mubr.f32.mxu0 0.0
    %180 = vmatmul.mubr.f32.gmra.mrb[0].mxu0 %v84
    %v181 = vpop.f32.mrb[0].mxu0
    %v182 = vadd.f32 %v68, %v181
    %v183 = vpop.f32.mrb[0].mxu0
    %184 = vmatprep.mubr.f32.mxu0 0.0
    %185 = vmatmul.mubr.f32.gmra.mrb[0].mxu0 %v87
    %v186 = vpop.f32.mrb[0].mxu0
    %v187 = vadd.f32 %v68, %v186
    %v188 = vpop.f32.mrb[0].mxu0
    %189 = vmatprep.mubr.f32.mxu0 0.0
    %190 = vmatmul.mubr.f32.gmra.mrb[0].mxu0 %v90
    %v191 = vpop.f32.mrb[0].mxu0
    %v192 = vadd.f32 %v68, %v191
    %v193 = vpop.f32.mrb[0].mxu0
    %194 = vmatprep.mubr.f32.mxu0 0.0
    %195 = vmatmul.mubr.f32.gmra.mrb[0].mxu0 %v93
    %v196 = vpop.f32.mrb[0].mxu0
    %v197 = vadd.f32 %v68, %v196
    %v198 = vpop.f32.mrb[0].mxu0
    %199 = vdwg.mxu0
    %v200 = vld [vmem:[%s1] sm:$0xff]
    %v201 = vld [vmem:[#allocation5] sm:$0xff]
    %v202 = vld [vmem:[#allocation5 + $0x8] sm:$0xff]
    %v203 = vld [vmem:[#allocation5 + $0x10] sm:$0xff]
    %v204 = vld [vmem:[#allocation5 + $0x18] sm:$0xff]
    %v205 = vlaneseq
    %v206 = vand.u32 %v205, 127
    %vm207 = vcmp.ge.s32.totalorder %v206, 64
    %vm208 = vcmp.lt.s32.totalorder %v206, 96
    %vm209 = vmand %vm207, %vm208
    %vm210 = vcmask 261120
    %v212 = vsel %vm210, 0.0, 0
    %214 = vmatprep.subr.mxu0 0.0
    %215 = vmatpush1.msra.mxu0 %v201
    %216 = vmatprep.subr.mxu0 0.0
    %217 = vmatpush1.msra.mxu0 %v202
    %218 = vmatprep.subr.mxu0 0.0
    %219 = vmatpush1.msra.mxu0 %v203
    %220 = vmatprep.subr.mxu0 0.0
    %221 = vmatpush1.msra.mxu0 %v204
    %222 = vmatprep.subr.mxu0 0.0
    %223 = vmatpush1.msra.mxu0 0.0
    %224 = vmatprep.subr.mxu0 0.0
    %225 = vmatpush1.msra.mxu0 0.0
    %226 = vmatprep.subr.mxu0 0.0
    %227 = vmatpush1.msra.mxu0 0.0
    %228 = vmatprep.subr.mxu0 0.0
    %229 = vmatpush1.msra.mxu0 0.0
    %230 = vmatprep.subr.mxu0 0.0
    %231 = vmatpush1.msra.mxu0 0.0
    %232 = vmatprep.subr.mxu0 0.0
    %233 = vmatpush1.msra.mxu0 0.0
    %234 = vmatprep.subr.mxu0 0.0
    %235 = vmatpush1.msra.mxu0 0.0
    %236 = vmatprep.subr.mxu0 0.0
    %237 = vmatpush1.msra.mxu0 0.0
    %238 = vmatprep.subr.mxu0 0.0
    %239 = vmatpush1.msra.mxu0 0.0
    %240 = vmatprep.subr.mxu0 0.0
    %241 = vmatpush1.msra.mxu0 0.0
    %242 = vmatprep.subr.mxu0 0.0
    %243 = vmatpush1.msra.mxu0 0.0
    %244 = vmatprep.subr.mxu0 0.0
    %245 = vmatpush1.msra.mxu0 0.0
    %246 = vmatprep.subr.mxu0 0.0
    %247 = vmatpush1.msra.mxu0 0.0
    %248 = vmatprep.subr.mxu0 0.0
    %249 = vmatpush1.msra.mxu0 0.0
    %250 = vmatprep.subr.mxu0 0.0
    %251 = vmatpush1.msra.mxu0 0.0
    %252 = vmatprep.subr.mxu0 0.0
    %253 = vmatpush1.msra.mxu0 0.0
    %254 = vmatprep.subr.mxu0 0.0
    %255 = vmatpush1.msra.mxu0 0.0
    %256 = vmatprep.subr.mxu0 0.0
    %257 = vmatpush1.msra.mxu0 0.0
    %258 = vmatprep.subr.mxu0 0.0
    %259 = vmatpush1.msra.mxu0 0.0
    %260 = vmatprep.subr.mxu0 0.0
    %261 = vmatpush1.msra.mxu0 0.0
    %262 = vmatprep.subr.mxu0 0.0
    %263 = vmatpush1.msra.mxu0 0.0
    %264 = vmatprep.subr.mxu0 0.0
    %265 = vmatpush1.msra.mxu0 0.0
    %266 = vmatprep.subr.mxu0 0.0
    %267 = vmatpush1.msra.mxu0 0.0
    %268 = vmatprep.subr.mxu0 0.0
    %269 = vmatpush1.msra.mxu0 0.0
    %270 = vmatprep.subr.mxu0 0.0
    %271 = vmatpush1.msra.mxu0 0.0
    %272 = vmatprep.subr.mxu0 0.0
    %273 = vmatpush1.msra.mxu0 0.0
    %274 = vmatprep.subr.mxu0 0.0
    %275 = vmatpush1.msra.mxu0 0.0
    %276 = vmatprep.subr.mxu0 0.0
    %277 = vmatpush1.msra.mxu0 0.0
    %278 = vmatprep.mubr.f32.mxu0 0.0
    %279 = vmatmul.mubr.f32.gmra.mrb[0].mxu0 %v212
    %v280 = vpop.f32.mrb[0].mxu0
    %v281 = vadd.f32 0.0, %v280
    %v282 = vpop.f32.mrb[0].mxu0
    %283 = vdwg.mxu0
    %v284 = vadd.f32 %v162, %v281
    %v285 = vtanh.pop %v284
    %v286 = vxor.u32 %v284, 2147483648
    %v287 = vmul.f32 %v286, 1.442695
    %v288 = vpow.pop %v287
    %v289 = vadd.f32 %v288, 1.0
    %v290 = vrcp.pop %v289
    %v291 = vmul.f32 1.0, %v290
    %v292 = vsel %vm209, %v285, %v291
    %v293 = vmul.f32 %v292, 0.0
    %295 = vrot.lane.b32.xlu0 %v292, 64
    %v296 = vpop.permute.xlu0 %295
    %v298 = vmul.f32 %v292, %v296
    %300 = vrot.lane.b32.xlu0 %v298, 32
    %v301 = vpop.permute.xlu0 %300
    %v303 = vadd.f32 %v293, %v301
    %v304 = vtanh.pop %v303
    %306 = vrot.lane.b32.xlu0 %v304, 64
    %v307 = vpop.permute.xlu0 %306
    %v309 = vmul.f32 %v292, %v307
    %vm310 = vcmp.gt.s32.totalorder %v200, 0
    %v311 = vsel %vm310, 1, 0
    %312 = vset.pattern.permute.xlu0 0
    %313 = vperm.xlu0 %312, %v311
    %v314 = vpop.permute.xlu0 %313
    %vm315 = vcmp.eq.s32.totalorder %v314, 1
    %v316 = vsel %vm315, %v309, 0.0
    %v317 = vsel %vm315, %v303, 0.0
    %319 = vrot.lane.b32.xlu0 %v316, 32
    %v320 = vpop.permute.xlu0 %319
    %v321 = vsel %vm210, %v320, 0
    %323 = vmatprep.subr.mxu0 0.0
    %324 = vmatpush1.msra.mxu0 %v201
    %325 = vmatprep.subr.mxu0 0.0
    %326 = vmatpush1.msra.mxu0 %v202
    %327 = vmatprep.subr.mxu0 0.0
    %328 = vmatpush1.msra.mxu0 %v203
    %329 = vmatprep.subr.mxu0 0.0
    %330 = vmatpush1.msra.mxu0 %v204
    %331 = vmatprep.subr.mxu0 0.0
    %332 = vmatpush1.msra.mxu0 0.0
    %333 = vmatprep.subr.mxu0 0.0
    %334 = vmatpush1.msra.mxu0 0.0
    %335 = vmatprep.subr.mxu0 0.0
    %336 = vmatpush1.msra.mxu0 0.0
    %337 = vmatprep.subr.mxu0 0.0
    %338 = vmatpush1.msra.mxu0 0.0
    %339 = vmatprep.subr.mxu0 0.0
    %340 = vmatpush1.msra.mxu0 0.0
    %341 = vmatprep.subr.mxu0 0.0
    %342 = vmatpush1.msra.mxu0 0.0
    %343 = vmatprep.subr.mxu0 0.0
    %344 = vmatpush1.msra.mxu0 0.0
    %345 = vmatprep.subr.mxu0 0.0
    %346 = vmatpush1.msra.mxu0 0.0
    %347 = vmatprep.subr.mxu0 0.0
    %348 = vmatpush1.msra.mxu0 0.0
    %349 = vmatprep.subr.mxu0 0.0
    %350 = vmatpush1.msra.mxu0 0.0
    %351 = vmatprep.subr.mxu0 0.0
    %352 = vmatpush1.msra.mxu0 0.0
    %353 = vmatprep.subr.mxu0 0.0
    %354 = vmatpush1.msra.mxu0 0.0
    %355 = vmatprep.subr.mxu0 0.0
    %356 = vmatpush1.msra.mxu0 0.0
    %357 = vmatprep.subr.mxu0 0.0
    %358 = vmatpush1.msra.mxu0 0.0
    %359 = vmatprep.subr.mxu0 0.0
    %360 = vmatpush1.msra.mxu0 0.0
    %361 = vmatprep.subr.mxu0 0.0
    %362 = vmatpush1.msra.mxu0 0.0
    %363 = vmatprep.subr.mxu0 0.0
    %364 = vmatpush1.msra.mxu0 0.0
    %365 = vmatprep.subr.mxu0 0.0
    %366 = vmatpush1.msra.mxu0 0.0
    %367 = vmatprep.subr.mxu0 0.0
    %368 = vmatpush1.msra.mxu0 0.0
    %369 = vmatprep.subr.mxu0 0.0
    %370 = vmatpush1.msra.mxu0 0.0
    %371 = vmatprep.subr.mxu0 0.0
    %372 = vmatpush1.msra.mxu0 0.0
    %373 = vmatprep.subr.mxu0 0.0
    %374 = vmatpush1.msra.mxu0 0.0
    %375 = vmatprep.subr.mxu0 0.0
    %376 = vmatpush1.msra.mxu0 0.0
    %377 = vmatprep.subr.mxu0 0.0
    %378 = vmatpush1.msra.mxu0 0.0
    %379 = vmatprep.subr.mxu0 0.0
    %380 = vmatpush1.msra.mxu0 0.0
    %381 = vmatprep.subr.mxu0 0.0
    %382 = vmatpush1.msra.mxu0 0.0
    %383 = vmatprep.subr.mxu0 0.0
    %384 = vmatpush1.msra.mxu0 0.0
    %385 = vmatprep.subr.mxu0 0.0
    %386 = vmatpush1.msra.mxu0 0.0
    %387 = vmatprep.mubr.f32.mxu0 0.0
    %388 = vmatmul.mubr.f32.gmra.mrb[0].mxu0 %v321
    %v389 = vpop.f32.mrb[0].mxu0
    %v390 = vadd.f32 0.0, %v389
    %v391 = vpop.f32.mrb[0].mxu0
    %392 = vdwg.mxu0
    %v393 = vadd.f32 %v167, %v390
    %v394 = vtanh.pop %v393
    %v395 = vxor.u32 %v393, 2147483648
    %v396 = vmul.f32 %v395, 1.442695
    %v397 = vpow.pop %v396
    %v398 = vadd.f32 %v397, 1.0
    %v399 = vrcp.pop %v398
    %v400 = vmul.f32 1.0, %v399
    %v401 = vsel %vm209, %v394, %v400
    %v402 = vmul.f32 %v401, %v317
    %404 = vrot.lane.b32.xlu0 %v401, 64
    %v405 = vpop.permute.xlu0 %404
    %v407 = vmul.f32 %v401, %v405
    %409 = vrot.lane.b32.xlu0 %v407, 32
    %v410 = vpop.permute.xlu0 %409
    %v412 = vadd.f32 %v402, %v410
    %v413 = vtanh.pop %v412
    %415 = vrot.lane.b32.xlu0 %v413, 64
    %v416 = vpop.permute.xlu0 %415
    %v418 = vmul.f32 %v401, %v416
    %vm419 = vcmp.gt.s32.totalorder %v200, 1
    %v420 = vsel %vm419, 1, 0
    %421 = vset.pattern.permute.xlu0 0
    %422 = vperm.xlu0 %421, %v420
    %v423 = vpop.permute.xlu0 %422
    %vm424 = vcmp.eq.s32.totalorder %v423, 1
    %v425 = vsel %vm424, %v418, %v316
    %v426 = vsel %vm424, %v412, %v317
    %v427 = vsel %vm424, %v418, 0.0
    %429 = vrot.lane.b32.xlu0 %v425, 32
    %v430 = vpop.permute.xlu0 %429
    %v431 = vsel %vm210, %v430, 0
    %433 = vmatprep.subr.mxu0 0.0
    %434 = vmatpush1.msra.mxu0 %v201
    %435 = vmatprep.subr.mxu0 0.0
    %436 = vmatpush1.msra.mxu0 %v202
    %437 = vmatprep.subr.mxu0 0.0
    %438 = vmatpush1.msra.mxu0 %v203
    %439 = vmatprep.subr.mxu0 0.0
    %440 = vmatpush1.msra.mxu0 %v204
    %441 = vmatprep.subr.mxu0 0.0
    %442 = vmatpush1.msra.mxu0 0.0
    %443 = vmatprep.subr.mxu0 0.0
    %444 = vmatpush1.msra.mxu0 0.0
    %445 = vmatprep.subr.mxu0 0.0
    %446 = vmatpush1.msra.mxu0 0.0
    %447 = vmatprep.subr.mxu0 0.0
    %448 = vmatpush1.msra.mxu0 0.0
    %449 = vmatprep.subr.mxu0 0.0
    %450 = vmatpush1.msra.mxu0 0.0
    %451 = vmatprep.subr.mxu0 0.0
    %452 = vmatpush1.msra.mxu0 0.0
    %453 = vmatprep.subr.mxu0 0.0
    %454 = vmatpush1.msra.mxu0 0.0
    %455 = vmatprep.subr.mxu0 0.0
    %456 = vmatpush1.msra.mxu0 0.0
    %457 = vmatprep.subr.mxu0 0.0
    %458 = vmatpush1.msra.mxu0 0.0
    %459 = vmatprep.subr.mxu0 0.0
    %460 = vmatpush1.msra.mxu0 0.0
    %461 = vmatprep.subr.mxu0 0.0
    %462 = vmatpush1.msra.mxu0 0.0
    %463 = vmatprep.subr.mxu0 0.0
    %464 = vmatpush1.msra.mxu0 0.0
    %465 = vmatprep.subr.mxu0 0.0
    %466 = vmatpush1.msra.mxu0 0.0
    %467 = vmatprep.subr.mxu0 0.0
    %468 = vmatpush1.msra.mxu0 0.0
    %469 = vmatprep.subr.mxu0 0.0
    %470 = vmatpush1.msra.mxu0 0.0
    %471 = vmatprep.subr.mxu0 0.0
    %472 = vmatpush1.msra.mxu0 0.0
    %473 = vmatprep.subr.mxu0 0.0
    %474 = vmatpush1.msra.mxu0 0.0
    %475 = vmatprep.subr.mxu0 0.0
    %476 = vmatpush1.msra.mxu0 0.0
    %477 = vmatprep.subr.mxu0 0.0
    %478 = vmatpush1.msra.mxu0 0.0
    %479 = vmatprep.subr.mxu0 0.0
    %480 = vmatpush1.msra.mxu0 0.0
    %481 = vmatprep.subr.mxu0 0.0
    %482 = vmatpush1.msra.mxu0 0.0
    %483 = vmatprep.subr.mxu0 0.0
    %484 = vmatpush1.msra.mxu0 0.0
    %485 = vmatprep.subr.mxu0 0.0
    %486 = vmatpush1.msra.mxu0 0.0
    %487 = vmatprep.subr.mxu0 0.0
    %488 = vmatpush1.msra.mxu0 0.0
    %489 = vmatprep.subr.mxu0 0.0
    %490 = vmatpush1.msra.mxu0 0.0
    %491 = vmatprep.subr.mxu0 0.0
    %492 = vmatpush1.msra.mxu0 0.0
    %493 = vmatprep.subr.mxu0 0.0
    %494 = vmatpush1.msra.mxu0 0.0
    %495 = vmatprep.subr.mxu0 0.0
    %496 = vmatpush1.msra.mxu0 0.0
    %497 = vmatprep.mubr.f32.mxu0 0.0
    %498 = vmatmul.mubr.f32.gmra.mrb[0].mxu0 %v431
    %v499 = vpop.f32.mrb[0].mxu0
    %v500 = vadd.f32 0.0, %v499
    %v501 = vpop.f32.mrb[0].mxu0
    %502 = vdwg.mxu0
    %v503 = vadd.f32 %v172, %v500
    %v504 = vtanh.pop %v503
    %v505 = vxor.u32 %v503, 2147483648
    %v506 = vmul.f32 %v505, 1.442695
    %v507 = vpow.pop %v506
    %v508 = vadd.f32 %v507, 1.0
    %v509 = vrcp.pop %v508
    %v510 = vmul.f32 1.0, %v509
    %v511 = vsel %vm209, %v504, %v510
    %v512 = vmul.f32 %v511, %v426
    %514 = vrot.lane.b32.xlu0 %v511, 64
    %v515 = vpop.permute.xlu0 %514
    %v517 = vmul.f32 %v511, %v515
    %519 = vrot.lane.b32.xlu0 %v517, 32
    %v520 = vpop.permute.xlu0 %519
    %v522 = vadd.f32 %v512, %v520
    %v523 = vtanh.pop %v522
    %525 = vrot.lane.b32.xlu0 %v523, 64
    %v526 = vpop.permute.xlu0 %525
    %v528 = vmul.f32 %v511, %v526
    %vm529 = vcmp.gt.s32.totalorder %v200, 2
    %v530 = vsel %vm529, 1, 0
    %531 = vset.pattern.permute.xlu0 0
    %532 = vperm.xlu0 %531, %v530
    %v533 = vpop.permute.xlu0 %532
    %vm534 = vcmp.eq.s32.totalorder %v533, 1
    %v535 = vsel %vm534, %v528, %v425
    %v536 = vsel %vm534, %v522, %v426
    %v537 = vsel %vm534, %v528, 0.0
    %539 = vrot.lane.b32.xlu0 %v535, 32
    %v540 = vpop.permute.xlu0 %539
    %v541 = vsel %vm210, %v540, 0
    %543 = vmatprep.subr.mxu0 0.0
    %544 = vmatpush1.msra.mxu0 %v201
    %545 = vmatprep.subr.mxu0 0.0
    %546 = vmatpush1.msra.mxu0 %v202
    %547 = vmatprep.subr.mxu0 0.0
    %548 = vmatpush1.msra.mxu0 %v203
    %549 = vmatprep.subr.mxu0 0.0
    %550 = vmatpush1.msra.mxu0 %v204
    %551 = vmatprep.subr.mxu0 0.0
    %552 = vmatpush1.msra.mxu0 0.0
    %553 = vmatprep.subr.mxu0 0.0
    %554 = vmatpush1.msra.mxu0 0.0
    %555 = vmatprep.subr.mxu0 0.0
    %556 = vmatpush1.msra.mxu0 0.0
    %557 = vmatprep.subr.mxu0 0.0
    %558 = vmatpush1.msra.mxu0 0.0
    %559 = vmatprep.subr.mxu0 0.0
    %560 = vmatpush1.msra.mxu0 0.0
    %561 = vmatprep.subr.mxu0 0.0
    %562 = vmatpush1.msra.mxu0 0.0
    %563 = vmatprep.subr.mxu0 0.0
    %564 = vmatpush1.msra.mxu0 0.0
    %565 = vmatprep.subr.mxu0 0.0
    %566 = vmatpush1.msra.mxu0 0.0
    %567 = vmatprep.subr.mxu0 0.0
    %568 = vmatpush1.msra.mxu0 0.0
    %569 = vmatprep.subr.mxu0 0.0
    %570 = vmatpush1.msra.mxu0 0.0
    %571 = vmatprep.subr.mxu0 0.0
    %572 = vmatpush1.msra.mxu0 0.0
    %573 = vmatprep.subr.mxu0 0.0
    %574 = vmatpush1.msra.mxu0 0.0
    %575 = vmatprep.subr.mxu0 0.0
    %576 = vmatpush1.msra.mxu0 0.0
    %577 = vmatprep.subr.mxu0 0.0
    %578 = vmatpush1.msra.mxu0 0.0
    %579 = vmatprep.subr.mxu0 0.0
    %580 = vmatpush1.msra.mxu0 0.0
    %581 = vmatprep.subr.mxu0 0.0
    %582 = vmatpush1.msra.mxu0 0.0
    %583 = vmatprep.subr.mxu0 0.0
    %584 = vmatpush1.msra.mxu0 0.0
    %585 = vmatprep.subr.mxu0 0.0
    %586 = vmatpush1.msra.mxu0 0.0
    %587 = vmatprep.subr.mxu0 0.0
    %588 = vmatpush1.msra.mxu0 0.0
    %589 = vmatprep.subr.mxu0 0.0
    %590 = vmatpush1.msra.mxu0 0.0
    %591 = vmatprep.subr.mxu0 0.0
    %592 = vmatpush1.msra.mxu0 0.0
    %593 = vmatprep.subr.mxu0 0.0
    %594 = vmatpush1.msra.mxu0 0.0
    %595 = vmatprep.subr.mxu0 0.0
    %596 = vmatpush1.msra.mxu0 0.0
    %597 = vmatprep.subr.mxu0 0.0
    %598 = vmatpush1.msra.mxu0 0.0
    %599 = vmatprep.subr.mxu0 0.0
    %600 = vmatpush1.msra.mxu0 0.0
    %601 = vmatprep.subr.mxu0 0.0
    %602 = vmatpush1.msra.mxu0 0.0
    %603 = vmatprep.subr.mxu0 0.0
    %604 = vmatpush1.msra.mxu0 0.0
    %605 = vmatprep.subr.mxu0 0.0
    %606 = vmatpush1.msra.mxu0 0.0
    %607 = vmatprep.mubr.f32.mxu0 0.0
    %608 = vmatmul.mubr.f32.gmra.mrb[0].mxu0 %v541
    %v609 = vpop.f32.mrb[0].mxu0
    %v610 = vadd.f32 0.0, %v609
    %v611 = vpop.f32.mrb[0].mxu0
    %612 = vdwg.mxu0
    %v613 = vadd.f32 %v177, %v610
    %v614 = vtanh.pop %v613
    %v615 = vxor.u32 %v613, 2147483648
    %v616 = vmul.f32 %v615, 1.442695
    %v617 = vpow.pop %v616
    %v618 = vadd.f32 %v617, 1.0
    %v619 = vrcp.pop %v618
    %v620 = vmul.f32 1.0, %v619
    %v621 = vsel %vm209, %v614, %v620
    %v622 = vmul.f32 %v621, %v536
    %624 = vrot.lane.b32.xlu0 %v621, 64
    %v625 = vpop.permute.xlu0 %624
    %v627 = vmul.f32 %v621, %v625
    %629 = vrot.lane.b32.xlu0 %v627, 32
    %v630 = vpop.permute.xlu0 %629
    %v632 = vadd.f32 %v622, %v630
    %v633 = vtanh.pop %v632
    %635 = vrot.lane.b32.xlu0 %v633, 64
    %v636 = vpop.permute.xlu0 %635
    %v638 = vmul.f32 %v621, %v636
    %vm639 = vcmp.gt.s32.totalorder %v200, 3
    %v640 = vsel %vm639, 1, 0
    %641 = vset.pattern.permute.xlu0 0
    %642 = vperm.xlu0 %641, %v640
    %v643 = vpop.permute.xlu0 %642
    %vm644 = vcmp.eq.s32.totalorder %v643, 1
    %v645 = vsel %vm644, %v638, %v535
    %v646 = vsel %vm644, %v632, %v536
    %v647 = vsel %vm644, %v638, 0.0
    %649 = vrot.lane.b32.xlu0 %v645, 32
    %v650 = vpop.permute.xlu0 %649
    %v651 = vsel %vm210, %v650, 0
    %653 = vmatprep.subr.mxu0 0.0
    %654 = vmatpush1.msra.mxu0 %v201
    %655 = vmatprep.subr.mxu0 0.0
    %656 = vmatpush1.msra.mxu0 %v202
    %657 = vmatprep.subr.mxu0 0.0
    %658 = vmatpush1.msra.mxu0 %v203
    %659 = vmatprep.subr.mxu0 0.0
    %660 = vmatpush1.msra.mxu0 %v204
    %661 = vmatprep.subr.mxu0 0.0
    %662 = vmatpush1.msra.mxu0 0.0
    %663 = vmatprep.subr.mxu0 0.0
    %664 = vmatpush1.msra.mxu0 0.0
    %665 = vmatprep.subr.mxu0 0.0
    %666 = vmatpush1.msra.mxu0 0.0
    %667 = vmatprep.subr.mxu0 0.0
    %668 = vmatpush1.msra.mxu0 0.0
    %669 = vmatprep.subr.mxu0 0.0
    %670 = vmatpush1.msra.mxu0 0.0
    %671 = vmatprep.subr.mxu0 0.0
    %672 = vmatpush1.msra.mxu0 0.0
    %673 = vmatprep.subr.mxu0 0.0
    %674 = vmatpush1.msra.mxu0 0.0
    %675 = vmatprep.subr.mxu0 0.0
    %676 = vmatpush1.msra.mxu0 0.0
    %677 = vmatprep.subr.mxu0 0.0
    %678 = vmatpush1.msra.mxu0 0.0
    %679 = vmatprep.subr.mxu0 0.0
    %680 = vmatpush1.msra.mxu0 0.0
    %681 = vmatprep.subr.mxu0 0.0
    %682 = vmatpush1.msra.mxu0 0.0
    %683 = vmatprep.subr.mxu0 0.0
    %684 = vmatpush1.msra.mxu0 0.0
    %685 = vmatprep.subr.mxu0 0.0
    %686 = vmatpush1.msra.mxu0 0.0
    %687 = vmatprep.subr.mxu0 0.0
    %688 = vmatpush1.msra.mxu0 0.0
    %689 = vmatprep.subr.mxu0 0.0
    %690 = vmatpush1.msra.mxu0 0.0
    %691 = vmatprep.subr.mxu0 0.0
    %692 = vmatpush1.msra.mxu0 0.0
    %693 = vmatprep.subr.mxu0 0.0
    %694 = vmatpush1.msra.mxu0 0.0
    %695 = vmatprep.subr.mxu0 0.0
    %696 = vmatpush1.msra.mxu0 0.0
    %697 = vmatprep.subr.mxu0 0.0
    %698 = vmatpush1.msra.mxu0 0.0
    %699 = vmatprep.subr.mxu0 0.0
    %700 = vmatpush1.msra.mxu0 0.0
    %701 = vmatprep.subr.mxu0 0.0
    %702 = vmatpush1.msra.mxu0 0.0
    %703 = vmatprep.subr.mxu0 0.0
    %704 = vmatpush1.msra.mxu0 0.0
    %705 = vmatprep.subr.mxu0 0.0
    %706 = vmatpush1.msra.mxu0 0.0
    %707 = vmatprep.subr.mxu0 0.0
    %708 = vmatpush1.msra.mxu0 0.0
    %709 = vmatprep.subr.mxu0 0.0
    %710 = vmatpush1.msra.mxu0 0.0
    %711 = vmatprep.subr.mxu0 0.0
    %712 = vmatpush1.msra.mxu0 0.0
    %713 = vmatprep.subr.mxu0 0.0
    %714 = vmatpush1.msra.mxu0 0.0
    %715 = vmatprep.subr.mxu0 0.0
    %716 = vmatpush1.msra.mxu0 0.0
    %717 = vmatprep.mubr.f32.mxu0 0.0
    %718 = vmatmul.mubr.f32.gmra.mrb[0].mxu0 %v651
    %v719 = vpop.f32.mrb[0].mxu0
    %v720 = vadd.f32 0.0, %v719
    %v721 = vpop.f32.mrb[0].mxu0
    %722 = vdwg.mxu0
    %v723 = vadd.f32 %v182, %v720
    %v724 = vtanh.pop %v723
    %v725 = vxor.u32 %v723, 2147483648
    %v726 = vmul.f32 %v725, 1.442695
    %v727 = vpow.pop %v726
    %v728 = vadd.f32 %v727, 1.0
    %v729 = vrcp.pop %v728
    %v730 = vmul.f32 1.0, %v729
    %v731 = vsel %vm209, %v724, %v730
    %v732 = vmul.f32 %v731, %v646
    %734 = vrot.lane.b32.xlu0 %v731, 64
    %v735 = vpop.permute.xlu0 %734
    %v737 = vmul.f32 %v731, %v735
    %739 = vrot.lane.b32.xlu0 %v737, 32
    %v740 = vpop.permute.xlu0 %739
    %v742 = vadd.f32 %v732, %v740
    %v743 = vtanh.pop %v742
    %745 = vrot.lane.b32.xlu0 %v743, 64
    %v746 = vpop.permute.xlu0 %745
    %v748 = vmul.f32 %v731, %v746
    %vm749 = vcmp.gt.s32.totalorder %v200, 4
    %v750 = vsel %vm749, 1, 0
    %751 = vset.pattern.permute.xlu0 0
    %752 = vperm.xlu0 %751, %v750
    %v753 = vpop.permute.xlu0 %752
    %vm754 = vcmp.eq.s32.totalorder %v753, 1
    %v755 = vsel %vm754, %v748, %v645
    %v756 = vsel %vm754, %v742, %v646
    %v757 = vsel %vm754, %v748, 0.0
    %759 = vrot.lane.b32.xlu0 %v755, 32
    %v760 = vpop.permute.xlu0 %759
    %v761 = vsel %vm210, %v760, 0
    %763 = vmatprep.subr.mxu0 0.0
    %764 = vmatpush1.msra.mxu0 %v201
    %765 = vmatprep.subr.mxu0 0.0
    %766 = vmatpush1.msra.mxu0 %v202
    %767 = vmatprep.subr.mxu0 0.0
    %768 = vmatpush1.msra.mxu0 %v203
    %769 = vmatprep.subr.mxu0 0.0
    %770 = vmatpush1.msra.mxu0 %v204
    %771 = vmatprep.subr.mxu0 0.0
    %772 = vmatpush1.msra.mxu0 0.0
    %773 = vmatprep.subr.mxu0 0.0
    %774 = vmatpush1.msra.mxu0 0.0
    %775 = vmatprep.subr.mxu0 0.0
    %776 = vmatpush1.msra.mxu0 0.0
    %777 = vmatprep.subr.mxu0 0.0
    %778 = vmatpush1.msra.mxu0 0.0
    %779 = vmatprep.subr.mxu0 0.0
    %780 = vmatpush1.msra.mxu0 0.0
    %781 = vmatprep.subr.mxu0 0.0
    %782 = vmatpush1.msra.mxu0 0.0
    %783 = vmatprep.subr.mxu0 0.0
    %784 = vmatpush1.msra.mxu0 0.0
    %785 = vmatprep.subr.mxu0 0.0
    %786 = vmatpush1.msra.mxu0 0.0
    %787 = vmatprep.subr.mxu0 0.0
    %788 = vmatpush1.msra.mxu0 0.0
    %789 = vmatprep.subr.mxu0 0.0
    %790 = vmatpush1.msra.mxu0 0.0
    %791 = vmatprep.subr.mxu0 0.0
    %792 = vmatpush1.msra.mxu0 0.0
    %793 = vmatprep.subr.mxu0 0.0
    %794 = vmatpush1.msra.mxu0 0.0
    %795 = vmatprep.subr.mxu0 0.0
    %796 = vmatpush1.msra.mxu0 0.0
    %797 = vmatprep.subr.mxu0 0.0
    %798 = vmatpush1.msra.mxu0 0.0
    %799 = vmatprep.subr.mxu0 0.0
    %800 = vmatpush1.msra.mxu0 0.0
    %801 = vmatprep.subr.mxu0 0.0
    %802 = vmatpush1.msra.mxu0 0.0
    %803 = vmatprep.subr.mxu0 0.0
    %804 = vmatpush1.msra.mxu0 0.0
    %805 = vmatprep.subr.mxu0 0.0
    %806 = vmatpush1.msra.mxu0 0.0
    %807 = vmatprep.subr.mxu0 0.0
    %808 = vmatpush1.msra.mxu0 0.0
    %809 = vmatprep.subr.mxu0 0.0
    %810 = vmatpush1.msra.mxu0 0.0
    %811 = vmatprep.subr.mxu0 0.0
    %812 = vmatpush1.msra.mxu0 0.0
    %813 = vmatprep.subr.mxu0 0.0
    %814 = vmatpush1.msra.mxu0 0.0
    %815 = vmatprep.subr.mxu0 0.0
    %816 = vmatpush1.msra.mxu0 0.0
    %817 = vmatprep.subr.mxu0 0.0
    %818 = vmatpush1.msra.mxu0 0.0
    %819 = vmatprep.subr.mxu0 0.0
    %820 = vmatpush1.msra.mxu0 0.0
    %821 = vmatprep.subr.mxu0 0.0
    %822 = vmatpush1.msra.mxu0 0.0
    %823 = vmatprep.subr.mxu0 0.0
    %824 = vmatpush1.msra.mxu0 0.0
    %825 = vmatprep.subr.mxu0 0.0
    %826 = vmatpush1.msra.mxu0 0.0
    %827 = vmatprep.mubr.f32.mxu0 0.0
    %828 = vmatmul.mubr.f32.gmra.mrb[0].mxu0 %v761
    %v829 = vpop.f32.mrb[0].mxu0
    %v830 = vadd.f32 0.0, %v829
    %v831 = vpop.f32.mrb[0].mxu0
    %832 = vdwg.mxu0
    %v833 = vadd.f32 %v187, %v830
    %v834 = vtanh.pop %v833
    %v835 = vxor.u32 %v833, 2147483648
    %v836 = vmul.f32 %v835, 1.442695
    %v837 = vpow.pop %v836
    %v838 = vadd.f32 %v837, 1.0
    %v839 = vrcp.pop %v838
    %v840 = vmul.f32 1.0, %v839
    %v841 = vsel %vm209, %v834, %v840
    %v842 = vmul.f32 %v841, %v756
    %844 = vrot.lane.b32.xlu0 %v841, 64
    %v845 = vpop.permute.xlu0 %844
    %v847 = vmul.f32 %v841, %v845
    %849 = vrot.lane.b32.xlu0 %v847, 32
    %v850 = vpop.permute.xlu0 %849
    %v852 = vadd.f32 %v842, %v850
    %v853 = vtanh.pop %v852
    %855 = vrot.lane.b32.xlu0 %v853, 64
    %v856 = vpop.permute.xlu0 %855
    %v858 = vmul.f32 %v841, %v856
    %vm859 = vcmp.gt.s32.totalorder %v200, 5
    %v860 = vsel %vm859, 1, 0
    %861 = vset.pattern.permute.xlu0 0
    %862 = vperm.xlu0 %861, %v860
    %v863 = vpop.permute.xlu0 %862
    %vm864 = vcmp.eq.s32.totalorder %v863, 1
    %v865 = vsel %vm864, %v858, %v755
    %v866 = vsel %vm864, %v852, %v756
    %v867 = vsel %vm864, %v858, 0.0
    %869 = vrot.lane.b32.xlu0 %v865, 32
    %v870 = vpop.permute.xlu0 %869
    %v871 = vsel %vm210, %v870, 0
    %873 = vmatprep.subr.mxu0 0.0
    %874 = vmatpush1.msra.mxu0 %v201
    %875 = vmatprep.subr.mxu0 0.0
    %876 = vmatpush1.msra.mxu0 %v202
    %877 = vmatprep.subr.mxu0 0.0
    %878 = vmatpush1.msra.mxu0 %v203
    %879 = vmatprep.subr.mxu0 0.0
    %880 = vmatpush1.msra.mxu0 %v204
    %881 = vmatprep.subr.mxu0 0.0
    %882 = vmatpush1.msra.mxu0 0.0
    %883 = vmatprep.subr.mxu0 0.0
    %884 = vmatpush1.msra.mxu0 0.0
    %885 = vmatprep.subr.mxu0 0.0
    %886 = vmatpush1.msra.mxu0 0.0
    %887 = vmatprep.subr.mxu0 0.0
    %888 = vmatpush1.msra.mxu0 0.0
    %889 = vmatprep.subr.mxu0 0.0
    %890 = vmatpush1.msra.mxu0 0.0
    %891 = vmatprep.subr.mxu0 0.0
    %892 = vmatpush1.msra.mxu0 0.0
    %893 = vmatprep.subr.mxu0 0.0
    %894 = vmatpush1.msra.mxu0 0.0
    %895 = vmatprep.subr.mxu0 0.0
    %896 = vmatpush1.msra.mxu0 0.0
    %897 = vmatprep.subr.mxu0 0.0
    %898 = vmatpush1.msra.mxu0 0.0
    %899 = vmatprep.subr.mxu0 0.0
    %900 = vmatpush1.msra.mxu0 0.0
    %901 = vmatprep.subr.mxu0 0.0
    %902 = vmatpush1.msra.mxu0 0.0
    %903 = vmatprep.subr.mxu0 0.0
    %904 = vmatpush1.msra.mxu0 0.0
    %905 = vmatprep.subr.mxu0 0.0
    %906 = vmatpush1.msra.mxu0 0.0
    %907 = vmatprep.subr.mxu0 0.0
    %908 = vmatpush1.msra.mxu0 0.0
    %909 = vmatprep.subr.mxu0 0.0
    %910 = vmatpush1.msra.mxu0 0.0
    %911 = vmatprep.subr.mxu0 0.0
    %912 = vmatpush1.msra.mxu0 0.0
    %913 = vmatprep.subr.mxu0 0.0
    %914 = vmatpush1.msra.mxu0 0.0
    %915 = vmatprep.subr.mxu0 0.0
    %916 = vmatpush1.msra.mxu0 0.0
    %917 = vmatprep.subr.mxu0 0.0
    %918 = vmatpush1.msra.mxu0 0.0
    %919 = vmatprep.subr.mxu0 0.0
    %920 = vmatpush1.msra.mxu0 0.0
    %921 = vmatprep.subr.mxu0 0.0
    %922 = vmatpush1.msra.mxu0 0.0
    %923 = vmatprep.subr.mxu0 0.0
    %924 = vmatpush1.msra.mxu0 0.0
    %925 = vmatprep.subr.mxu0 0.0
    %926 = vmatpush1.msra.mxu0 0.0
    %927 = vmatprep.subr.mxu0 0.0
    %928 = vmatpush1.msra.mxu0 0.0
    %929 = vmatprep.subr.mxu0 0.0
    %930 = vmatpush1.msra.mxu0 0.0
    %931 = vmatprep.subr.mxu0 0.0
    %932 = vmatpush1.msra.mxu0 0.0
    %933 = vmatprep.subr.mxu0 0.0
    %934 = vmatpush1.msra.mxu0 0.0
    %935 = vmatprep.subr.mxu0 0.0
    %936 = vmatpush1.msra.mxu0 0.0
    %937 = vmatprep.mubr.f32.mxu0 0.0
    %938 = vmatmul.mubr.f32.gmra.mrb[0].mxu0 %v871
    %v939 = vpop.f32.mrb[0].mxu0
    %v940 = vadd.f32 0.0, %v939
    %v941 = vpop.f32.mrb[0].mxu0
    %942 = vdwg.mxu0
    %v943 = vadd.f32 %v192, %v940
    %v944 = vtanh.pop %v943
    %v945 = vxor.u32 %v943, 2147483648
    %v946 = vmul.f32 %v945, 1.442695
    %v947 = vpow.pop %v946
    %v948 = vadd.f32 %v947, 1.0
    %v949 = vrcp.pop %v948
    %v950 = vmul.f32 1.0, %v949
    %v951 = vsel %vm209, %v944, %v950
    %v952 = vmul.f32 %v951, %v866
    %954 = vrot.lane.b32.xlu0 %v951, 64
    %v955 = vpop.permute.xlu0 %954
    %v957 = vmul.f32 %v951, %v955
    %959 = vrot.lane.b32.xlu0 %v957, 32
    %v960 = vpop.permute.xlu0 %959
    %v962 = vadd.f32 %v952, %v960
    %v963 = vtanh.pop %v962
    %965 = vrot.lane.b32.xlu0 %v963, 64
    %v966 = vpop.permute.xlu0 %965
    %v968 = vmul.f32 %v951, %v966
    %vm969 = vcmp.gt.s32.totalorder %v200, 6
    %v970 = vsel %vm969, 1, 0
    %971 = vset.pattern.permute.xlu0 0
    %972 = vperm.xlu0 %971, %v970
    %v973 = vpop.permute.xlu0 %972
    %vm974 = vcmp.eq.s32.totalorder %v973, 1
    %v975 = vsel %vm974, %v968, %v865
    %v976 = vsel %vm974, %v962, %v866
    %v977 = vsel %vm974, %v968, 0.0
    %979 = vrot.lane.b32.xlu0 %v975, 32
    %v980 = vpop.permute.xlu0 %979
    %v981 = vsel %vm210, %v980, 0
    %983 = vmatprep.subr.mxu0 0.0
    %984 = vmatpush1.msra.mxu0 %v201
    %985 = vmatprep.subr.mxu0 0.0
    %986 = vmatpush1.msra.mxu0 %v202
    %987 = vmatprep.subr.mxu0 0.0
    %988 = vmatpush1.msra.mxu0 %v203
    %989 = vmatprep.subr.mxu0 0.0
    %990 = vmatpush1.msra.mxu0 %v204
    %991 = vmatprep.subr.mxu0 0.0
    %992 = vmatpush1.msra.mxu0 0.0
    %993 = vmatprep.subr.mxu0 0.0
    %994 = vmatpush1.msra.mxu0 0.0
    %995 = vmatprep.subr.mxu0 0.0
    %996 = vmatpush1.msra.mxu0 0.0
    %997 = vmatprep.subr.mxu0 0.0
    %998 = vmatpush1.msra.mxu0 0.0
    %999 = vmatprep.subr.mxu0 0.0
    %1000 = vmatpush1.msra.mxu0 0.0
    %1001 = vmatprep.subr.mxu0 0.0
    %1002 = vmatpush1.msra.mxu0 0.0
    %1003 = vmatprep.subr.mxu0 0.0
    %1004 = vmatpush1.msra.mxu0 0.0
    %1005 = vmatprep.subr.mxu0 0.0
    %1006 = vmatpush1.msra.mxu0 0.0
    %1007 = vmatprep.subr.mxu0 0.0
    %1008 = vmatpush1.msra.mxu0 0.0
    %1009 = vmatprep.subr.mxu0 0.0
    %1010 = vmatpush1.msra.mxu0 0.0
    %1011 = vmatprep.subr.mxu0 0.0
    %1012 = vmatpush1.msra.mxu0 0.0
    %1013 = vmatprep.subr.mxu0 0.0
    %1014 = vmatpush1.msra.mxu0 0.0
    %1015 = vmatprep.subr.mxu0 0.0
    %1016 = vmatpush1.msra.mxu0 0.0
    %1017 = vmatprep.subr.mxu0 0.0
    %1018 = vmatpush1.msra.mxu0 0.0
    %1019 = vmatprep.subr.mxu0 0.0
    %1020 = vmatpush1.msra.mxu0 0.0
    %1021 = vmatprep.subr.mxu0 0.0
    %1022 = vmatpush1.msra.mxu0 0.0
    %1023 = vmatprep.subr.mxu0 0.0
    %1024 = vmatpush1.msra.mxu0 0.0
    %1025 = vmatprep.subr.mxu0 0.0
    %1026 = vmatpush1.msra.mxu0 0.0
    %1027 = vmatprep.subr.mxu0 0.0
    %1028 = vmatpush1.msra.mxu0 0.0
    %1029 = vmatprep.subr.mxu0 0.0
    %1030 = vmatpush1.msra.mxu0 0.0
    %1031 = vmatprep.subr.mxu0 0.0
    %1032 = vmatpush1.msra.mxu0 0.0
    %1033 = vmatprep.subr.mxu0 0.0
    %1034 = vmatpush1.msra.mxu0 0.0
    %1035 = vmatprep.subr.mxu0 0.0
    %1036 = vmatpush1.msra.mxu0 0.0
    %1037 = vmatprep.subr.mxu0 0.0
    %1038 = vmatpush1.msra.mxu0 0.0
    %1039 = vmatprep.subr.mxu0 0.0
    %1040 = vmatpush1.msra.mxu0 0.0
    %1041 = vmatprep.subr.mxu0 0.0
    %1042 = vmatpush1.msra.mxu0 0.0
    %1043 = vmatprep.subr.mxu0 0.0
    %1044 = vmatpush1.msra.mxu0 0.0
    %1045 = vmatprep.subr.mxu0 0.0
    %1046 = vmatpush1.msra.mxu0 0.0
    %1047 = vmatprep.mubr.f32.mxu0 0.0
    %1048 = vmatmul.mubr.f32.gmra.mrb[0].mxu0 %v981
    %v1049 = vpop.f32.mrb[0].mxu0
    %v1050 = vadd.f32 0.0, %v1049
    %v1051 = vpop.f32.mrb[0].mxu0
    %1052 = vdwg.mxu0
    %v1053 = vadd.f32 %v197, %v1050
    %v1054 = vtanh.pop %v1053
    %v1055 = vxor.u32 %v1053, 2147483648
    %v1056 = vmul.f32 %v1055, 1.442695
    %v1057 = vpow.pop %v1056
    %v1058 = vadd.f32 %v1057, 1.0
    %v1059 = vrcp.pop %v1058
    %v1060 = vmul.f32 1.0, %v1059
    %v1061 = vsel %vm209, %v1054, %v1060
    %v1062 = vmul.f32 %v1061, %v976
    %1064 = vrot.lane.b32.xlu0 %v1061, 64
    %v1065 = vpop.permute.xlu0 %1064
    %v1067 = vmul.f32 %v1061, %v1065
    %1069 = vrot.lane.b32.xlu0 %v1067, 32
    %v1070 = vpop.permute.xlu0 %1069
    %v1072 = vadd.f32 %v1062, %v1070
    %v1073 = vtanh.pop %v1072
    %1075 = vrot.lane.b32.xlu0 %v1073, 64
    %v1076 = vpop.permute.xlu0 %1075
    %v1078 = vmul.f32 %v1061, %v1076
    %vm1079 = vcmp.gt.s32.totalorder %v200, 7
    %v1080 = vsel %vm1079, 1, 0
    %1081 = vset.pattern.permute.xlu0 0
    %1082 = vperm.xlu0 %1081, %v1080
    %v1083 = vpop.permute.xlu0 %1082
    %vm1084 = vcmp.eq.s32.totalorder %v1083, 1
    %v1085 = vsel %vm1084, %v1078, %v975
    %v1086 = vsel %vm1084, %v1072, %v976
    %v1087 = vsel %vm1084, %v1078, 0.0
    %1090 = vrot.lane.b32.xlu0 %v427, 64
    %v1091 = vpop.permute.xlu0 %1090
    %1094 = vrot.lane.b32.xlu0 %v537, 96
    %v1095 = vpop.permute.xlu0 %1094
    %1098 = vrot.lane.b32.xlu0 %v757, 32
    %v1099 = vpop.permute.xlu0 %1098
    %1102 = vrot.lane.b32.xlu0 %v867, 64
    %v1103 = vpop.permute.xlu0 %1102
    %1106 = vrot.lane.b32.xlu0 %v977, 96
    %v1107 = vpop.permute.xlu0 %1106
    %v1109 = vsel %vm210, %v320, %v1091
    %vm1110 = vcmask 523264
    %v1111 = vsel %vm1110, %v1109, %v1095
    %vm1112 = vcmask 785408
    %v1113 = vsel %vm1112, %v1111, %v647
    %v1114 = vsel %vm210, %v1099, %v1103
    %v1115 = vsel %vm1110, %v1114, %v1107
    %v1116 = vsel %vm1112, %v1115, %v1087
    %1117 = vst [vmem:[%s5] sm:$0xff] %v1113
    %1118 = vst [vmem:[%s5 + $0x8] sm:$0xff] %v1116
    %1120 = vrot.lane.b32.xlu0 %v1085, 32
    %v1121 = vpop.permute.xlu0 %1120
    %1123 = vst.msk [vmem:[#allocation7] sm:$0xff] %vm210, %v1121
    %1125 = vrot.lane.b32.xlu0 %v1086, 96
    %v1126 = vpop.permute.xlu0 %1125
    %1128 = vst.msk [vmem:[#allocation8] sm:$0xff] %vm210, %v1126
    // Predicated region
    $region30: #{_encoder_lstm_forward.1} parent=1 // pred_check
      _
    $region31: #{_encoder_lstm_forward.1} parent=1 // pred_check_branch
      %1130 = sbr.rel (0) target = $region33
    $region32: #{_encoder_lstm_forward.1} parent=1 // pred_region
      _
    $region33: #{_encoder_lstm_forward.1} parent=1 // pred_fallthru
      _
    // Predicated region
    $region34: #{_encoder_lstm_forward.1} parent=1 // pred_check
      _
    $region35: #{_encoder_lstm_forward.1} parent=1 // pred_check_branch
      %1132 = sbr.rel (0) target = $region37
    $region36: #{_encoder_lstm_forward.1} parent=1 // pred_region
      %s1134 = ssub.s32 128, 128
      %1135 = vsyncadd [#allocation4], %s1134
      %s1137 = sshll.u32 [#allocation7], 4
      %s1138 = int_to_ptr.vmem [resolvable:$true] %s1137
      %1140 = dma.vmem_to_hbm [thread:$0]  %s1138, 128, %s6, [#allocation4]
    $region37: #{_encoder_lstm_forward.1} parent=1 // pred_fallthru
      _
    // Predicated region
    $region38: #{_encoder_lstm_forward.1} parent=1 // pred_check
      _
    $region39: #{_encoder_lstm_forward.1} parent=1 // pred_check_branch
      %1142 = sbr.rel (0) target = $region41
    $region40: #{_encoder_lstm_forward.1} parent=1 // pred_region
      %s1144 = ssub.s32 128, 128
      %1145 = vsyncadd [#allocation9], %s1144
      %s1147 = sshll.u32 [#allocation8], 4
      %s1148 = int_to_ptr.vmem [resolvable:$true] %s1147
      %1150 = dma.vmem_to_hbm [thread:$0]  %s1148, 128, %s7, [#allocation9]
    $region41: #{_encoder_lstm_forward.1} parent=1 // pred_fallthru
      _
    // Predicated region
    $region42: #{_encoder_lstm_forward.1} parent=1 // pred_check
      _
    $region43: #{_encoder_lstm_forward.1} parent=1 // pred_check_branch
      %1152 = sbr.rel (0) target = $region45
    $region44: #{_encoder_lstm_forward.1} parent=1 // pred_region
      _
    $region45: #{_encoder_lstm_forward.1} parent=1 // pred_fallthru
      _
    // Predicated region
    $region46: #{_encoder_lstm_forward.1} parent=1 // pred_check
      _
    $region47: #{_encoder_lstm_forward.1} parent=1 // pred_check_branch
      %1154 = sbr.rel (0) target = $region49
    $region48: #{_encoder_lstm_forward.1} parent=1 // pred_region
      %1155 = dma.done [#allocation4], 128
    $region49: #{_encoder_lstm_forward.1} parent=1 // pred_fallthru
      _
    // Predicated region
    $region50: #{_encoder_lstm_forward.1} parent=1 // pred_check
      _
    $region51: #{_encoder_lstm_forward.1} parent=1 // pred_check_branch
      %1157 = sbr.rel (0) target = $region53
    $region52: #{_encoder_lstm_forward.1} parent=1 // pred_region
      %1158 = dma.done [#allocation9], 128
    $region53: #{_encoder_lstm_forward.1} parent=1 // pred_fallthru
      _
    %1159 = vsyncpa [#allocation3], 1
    %1160 = vsyncpa [#allocation6], 1
    %1161 = vsyncpa [#allocation4], 1
    %1162 = vsyncpa [#allocation9], 1

</llo_original>
